<compile_context>
chip_gen: v7x
topology: tpu7x:2x2x1
jax: 0.10.0
libtpu: 0.0.40
codegen_flags: <defaults>
</compile_context>

<pallas_src>
import math

import jax
import jax.numpy as jnp
from jax.experimental import pallas as pl
from jax.experimental.pallas import tpu as pltpu


_INV_SQRT2 = 0.7071067811865476
_SQRT_2_OVER_PI = 0.7978845608028654

_DEFAULT_BATCH_TILE = 4096      # lanes; multiple of 128
_MIN_MEGACORE_TILE = 2048       # never shrink a per-TC tile below this for megacore


def _gelu_erf(x):
    # PyTorch nn.GELU() default: exact erf-based GELU (kept in f32).
    return 0.5 * x * (1.0 + jax.lax.erf(x * _INV_SQRT2))


def _gelu_tanh(x):
    # tanh approximation: transcendental lands in the EUP slot (cheap vs the
    # VALU erf polynomial) but intentionally deviates from PyTorch's default.
    return 0.5 * x * (1.0 + jnp.tanh(_SQRT_2_OVER_PI * (x + 0.044715 * x * x * x)))


def _make_mlp_kernel(num_hidden_layers: int, mxu_dtype, approximate_gelu: bool):
    """Kernel over the transposed layout: activations live as (features, batch_tile)
    so the batch sits on the 128-wide lane axis (feature dims here are all < 128).

    Ref order (all VMEM tiles):
      x_ref,                                      # (tb, in_dim)   natural layout
      W0, b0,                                     # input layer    (h0, in_dim), (h0, 1)
      [Wm_i, Wr_i, b_i] * (num_hidden_layers-1)   # hidden layers on cat([h, x])
      Wout_m, Wout_r, bout,                       # output layer  on cat([h, x])
      out_ref                                     # (tb, out_dim)  natural layout
    """
    gelu = _gelu_tanh if approximate_gelu else _gelu_erf

    def mm(w, v):
        # MXU matmul; always accumulate in f32.
        return jnp.dot(w, v, preferred_element_type=jnp.float32)

    def kernel(x_ref, *refs):
        out_ref = refs[-1]
        p = refs[:-1]

        # In-kernel transpose (XLU slot is idle in this VALU-bound body):
        # put the batch tile on the lane axis.
        x = x_ref[...].T                                   # (in_dim, tb)

        i = 0
        # input layer: gelu(W0 @ x + b0)
        h = gelu(mm(p[i][...], x) + p[i + 1][...]).astype(mxu_dtype)
        i += 2

        # hidden layers: gelu(W @ cat([h, x]) + b) == gelu(Wm @ h + Wr @ x + b)
        for _ in range(num_hidden_layers - 1):
            wm, wr, b = p[i][...], p[i + 1][...], p[i + 2][...]
            i += 3
            h = gelu(mm(wm, h) + mm(wr, x) + b).astype(mxu_dtype)

        # output layer: cat([h, x]) -> out_dim (no activation)
        wm, wr, b = p[i][...], p[i + 1][...], p[i + 2][...]
        out = mm(wm, h) + mm(wr, x) + b                    # (out_dim, tb), f32
        # Transpose back so the wrapper needs NO extra HBM transpose pass.
        out_ref[...] = out.T.astype(out_ref.dtype)         # (tb, out_dim)

    return kernel


def init_mlp_params(key, in_dim, out_dim, hidden_dims):
    """Deterministic params mimicking PyTorch nn.Linear default init.

    Weights are stored in PyTorch orientation (fan_out, fan_in); biases as
    (fan_out, 1).  Layers that consume cat([h, x_orig]) are pre-split
    column-wise into (W_main, W_residual)."""

    def linear(k, fan_in, fan_out):
        kw, kb = jax.random.split(k)
        bound = 1.0 / math.sqrt(fan_in)
        w = jax.random.uniform(kw, (fan_out, fan_in), jnp.float32, -bound, bound)
        b = jax.random.uniform(kb, (fan_out, 1), jnp.float32, -bound, bound)
        return w, b

    keys = jax.random.split(key, len(hidden_dims) + 1)
    params = []

    w0, b0 = linear(keys[0], in_dim, hidden_dims[0])
    params += [w0, b0]

    prev = hidden_dims[0]
    for li, h in enumerate(hidden_dims[1:], start=1):
        w, b = linear(keys[li], prev + in_dim, h)
        params += [w[:, :prev], w[:, prev:], b]            # split for cat([h, x])
        prev = h

    wout, bout = linear(keys[-1], prev + in_dim, out_dim)
    params += [wout[:, :prev], wout[:, prev:], bout]
    return params


def _cast_params(params, num_hidden_layers, mxu_dtype):
    """Pre-cast weights to the MXU feed dtype OUTSIDE the kernel (done once,
    not per grid step); biases are added to the f32 accumulator so they stay f32."""
    out, i = [], 0

    def take(n_weights):
        nonlocal i
        ws = [params[i + k].astype(mxu_dtype) for k in range(n_weights)]
        b = params[i + n_weights].astype(jnp.float32)
        i += n_weights + 1
        return ws + [b]

    out += take(1)                                         # input layer (W0, b0)
    for _ in range(num_hidden_layers - 1):
        out += take(2)                                     # hidden (Wm, Wr, b)
    out += take(2)                                         # output (Wm, Wr, b)
    return out


def _vmem_capacity_bytes():
    try:
        cap = int(pltpu.get_tpu_info().vmem_capacity_bytes)
        if cap > 0:
            return cap
    except Exception:
        pass
    return 64 << 20        # conservative fallback (v7x per-TC VMEM)


def _num_tensorcores_per_chip():
    try:
        kind = jax.devices()[0].device_kind.lower()
        if "v7" in kind or "7x" in kind:
            return 2       # v7x: two TensorCores per chip
    except Exception:
        pass
    return 1               # v5e / v6e: one TensorCore -> grid is a serial loop


def _pick_batch_tile(batch, requested):
    """Lane-dense batch tile (multiple of 128).  Large by default so per-grid-step
    overhead (~0.35us) is amortized; only split a small batch for megacore when
    the chip actually has 2 TensorCores AND each half stays >= 2048 lanes."""
    if requested is not None:
        tb = min(int(requested), batch)
        if tb >= batch:
            return batch
        return max(128, (tb // 128) * 128)
    if batch > _DEFAULT_BATCH_TILE:
        return _DEFAULT_BATCH_TILE
    if _num_tensorcores_per_chip() >= 2 and batch >= 2 * _MIN_MEGACORE_TILE:
        half = ((batch // 2) // 128) * 128
        if half >= _MIN_MEGACORE_TILE:
            return half
    return batch                                           # single full-batch tile


def _round_up(v, m):
    return ((v + m - 1) // m) * m


def mlp_forward(x, params, *, in_dim, out_dim, hidden_dims,
                batch_tile=None, use_bf16_matmul=False, approximate_gelu=False):
    """Run the Pallas MLP kernel. x: (batch, in_dim), (in_dim,), or (batch, ...)."""
    orig_ndim = x.ndim
    if x.ndim == 1:                                        # torch: unsqueeze(0)
        x = x[None, :]
    elif x.ndim > 2:                                       # torch: flatten(start_dim=1)
        x = x.reshape(x.shape[0], -1)
        # TODO(synk): the torch module's view-back for >2D inputs is only valid for
        # degenerate shapes; we return (batch, out_dim) here.
    assert x.ndim == 2 and x.shape[-1] == in_dim

    batch = x.shape[0]
    out_dtype = x.dtype
    num_hidden_layers = len(hidden_dims)

    mxu_dtype = jnp.bfloat16 if use_bf16_matmul else jnp.float32
    params_k = _cast_params(params, num_hidden_layers, mxu_dtype)
    x_k = x.astype(mxu_dtype) if use_bf16_matmul else x    # halves the x HBM read

    tb = _pick_batch_tile(batch, batch_tile)

    # --- VMEM budget (accounts for 128-lane padding of the narrow blocks) ------
    cap = _vmem_capacity_bytes()
    ceiling = int(cap * 3 // 4)                            # headroom below physical VMEM
    x_itemsize = jnp.dtype(x_k.dtype).itemsize
    out_itemsize = jnp.dtype(out_dtype).itemsize
    param_b = sum(int(p.size) * jnp.dtype(p.dtype).itemsize for p in params_k)
    # transposed f32 intermediates: x_t, each h, a pre-activation temp, out
    feat_b = (in_dim + sum(hidden_dims) + max(hidden_dims) + out_dim) * 4

    def footprint(t):
        x_tile = t * _round_up(in_dim, 128) * x_itemsize
        o_tile = t * _round_up(out_dim, 128) * out_itemsize
        return 2 * (x_tile + o_tile) + 2 * param_b + feat_b * t

    while tb > 128 and footprint(tb) > ceiling:
        tb = max(128, ((tb // 2) // 128) * 128)

    grid = (pl.cdiv(batch, tb),)
    vmem_limit = int(min(max(2 * footprint(tb), 32 << 20), ceiling))

    # --- specs ------------------------------------------------------------------
    x_spec = pl.BlockSpec((tb, in_dim), lambda i: (i, 0))
    # Parameters are tiny with a constant index_map -> effectively resident.
    param_specs = [pl.BlockSpec(p.shape, lambda i: (0, 0)) for p in params_k]
    out_spec = pl.BlockSpec((tb, out_dim), lambda i: (i, 0))

    # Advisory cost estimate for XLA's scheduler.
    flops_per_row = 2 * in_dim * hidden_dims[0]
    prev = hidden_dims[0]
    for h in hidden_dims[1:]:
        flops_per_row += 2 * (prev + in_dim) * h
        prev = h
    flops_per_row += 2 * (prev + in_dim) * out_dim
    cost = pl.CostEstimate(
        flops=int(flops_per_row) * int(batch),
        transcendentals=int(sum(hidden_dims)) * int(batch),
        bytes_accessed=int(batch * in_dim * x_itemsize + param_b
                           + batch * out_dim * out_itemsize),
    )

    kernel = _make_mlp_kernel(num_hidden_layers, mxu_dtype, approximate_gelu)

    out = pl.pallas_call(
        kernel,
        out_shape=jax.ShapeDtypeStruct((batch, out_dim), out_dtype),
        grid=grid,
        in_specs=[x_spec] + param_specs,
        out_specs=out_spec,
        compiler_params=pltpu.CompilerParams(
            dimension_semantics=("parallel",),
            vmem_limit_bytes=vmem_limit),
        cost_estimate=cost,
    )(x_k, *params_k)

    if orig_ndim == 1:
        out = out[0]
    return out


def mlp_reference(x, params, num_hidden_layers, approximate=False):
    """Pure-JAX reference of the same forward (for correctness checks)."""
    i = 0
    w0, b0 = params[i], params[i + 1]
    i += 2
    h = jax.nn.gelu(x @ w0.T + b0[:, 0], approximate=approximate)
    for _ in range(num_hidden_layers - 1):
        wm, wr, b = params[i], params[i + 1], params[i + 2]
        i += 3
        h = jax.nn.gelu(h @ wm.T + x @ wr.T + b[:, 0], approximate=approximate)
    wm, wr, b = params[i], params[i + 1], params[i + 2]
    return h @ wm.T + x @ wr.T + b[:, 0]


if __name__ == "__main__":
    # Small shapes consistent with the module's forward: x is (batch, in_dim).
    IN_DIM, OUT_DIM = 16, 8
    HIDDEN_DIMS = [64, 32]
    BATCH = 512

    key = jax.random.PRNGKey(0)
    k_params, k_x, k_x2 = jax.random.split(key, 3)

    params = init_mlp_params(k_params, IN_DIM, OUT_DIM, HIDDEN_DIMS)
    x = jax.random.normal(k_x, (BATCH, IN_DIM), dtype=jnp.float32)

    # 1) Default path: exact erf GELU, f32 MXU — matches PyTorch nn.GELU() semantics.
    out = jax.block_until_ready(
        mlp_forward(x, params, in_dim=IN_DIM, out_dim=OUT_DIM, hidden_dims=HIDDEN_DIMS))
    ref = jax.block_until_ready(mlp_reference(x, params, len(HIDDEN_DIMS)))
    assert out.shape == (BATCH, OUT_DIM)
    assert jnp.allclose(out, ref, atol=2e-5, rtol=2e-5), "f32 mismatch vs reference"

    # 2) Ragged batch + explicit small tile (exercises partial-tile masking, multi-step grid).
    x_r = jax.random.normal(k_x2, (200, IN_DIM), dtype=jnp.float32)
    out_r = jax.block_until_ready(
        mlp_forward(x_r, params, in_dim=IN_DIM, out_dim=OUT_DIM, hidden_dims=HIDDEN_DIMS,
                    batch_tile=128))
    ref_r = mlp_reference(x_r, params, len(HIDDEN_DIMS))
    assert out_r.shape == (200, OUT_DIM)
    assert jnp.allclose(out_r, ref_r, atol=2e-5, rtol=2e-5), "ragged-batch mismatch"

    # 3) bf16-fed MXU path (weights + x pre-cast outside the kernel; f32 accumulation
    #    and f32 GELU).  Tolerance sized for intentional bf16 input rounding.
    out_bf16 = jax.block_until_ready(
        mlp_forward(x, params, in_dim=IN_DIM, out_dim=OUT_DIM, hidden_dims=HIDDEN_DIMS,
                    use_bf16_matmul=True))
    assert out_bf16.shape == (BATCH, OUT_DIM)
    assert jnp.allclose(out_bf16, ref, atol=5e-2, rtol=5e-2), "bf16 path diverged"

    # 4) Optional tanh-approx GELU (EUP path) — intentional deviation from the erf
    #    default; validated against the matching tanh-GELU reference.
    out_tanh = jax.block_until_ready(
        mlp_forward(x, params, in_dim=IN_DIM, out_dim=OUT_DIM, hidden_dims=HIDDEN_DIMS,
                    approximate_gelu=True))
    ref_tanh = mlp_reference(x, params, len(HIDDEN_DIMS), approximate=True)
    assert jnp.allclose(out_tanh, ref_tanh, atol=1e-4, rtol=1e-4), "tanh path mismatch"

    print("KERNEL_OK")
</pallas_src>

<mosaic_0001>
module attributes {stable_mosaic.version = 11 : i64} {
  func.func @kernel(%arg0: i32, %arg1: memref<512x16xf32, #tpu.memory_space<vmem>>, %arg2: memref<64x16xf32, #tpu.memory_space<vmem>>, %arg3: memref<64x1xf32, #tpu.memory_space<vmem>>, %arg4: memref<32x64xf32, #tpu.memory_space<vmem>>, %arg5: memref<32x16xf32, #tpu.memory_space<vmem>>, %arg6: memref<32x1xf32, #tpu.memory_space<vmem>>, %arg7: memref<8x32xf32, #tpu.memory_space<vmem>>, %arg8: memref<8x16xf32, #tpu.memory_space<vmem>>, %arg9: memref<8x1xf32, #tpu.memory_space<vmem>>, %arg10: memref<512x8xf32, #tpu.memory_space<vmem>>) attributes {dimension_semantics = [#tpu.dimension_semantics<parallel>], iteration_bounds = array<i64: 1>, scalar_prefetch = 0 : i64, scratch_operands = 0 : i64, tpu.core_type = #tpu.core_type<tc>, window_params = [{transform_indices = @transform_0, window_bounds = array<i64: 512, 16>}, {pipeline_mode = #tpu.pipeline_mode<synchronous>, transform_indices = @transform_1, window_bounds = array<i64: 64, 16>}, {pipeline_mode = #tpu.pipeline_mode<synchronous>, transform_indices = @transform_2, window_bounds = array<i64: 64, 1>}, {pipeline_mode = #tpu.pipeline_mode<synchronous>, transform_indices = @transform_3, window_bounds = array<i64: 32, 64>}, {pipeline_mode = #tpu.pipeline_mode<synchronous>, transform_indices = @transform_4, window_bounds = array<i64: 32, 16>}, {pipeline_mode = #tpu.pipeline_mode<synchronous>, transform_indices = @transform_5, window_bounds = array<i64: 32, 1>}, {pipeline_mode = #tpu.pipeline_mode<synchronous>, transform_indices = @transform_6, window_bounds = array<i64: 8, 32>}, {pipeline_mode = #tpu.pipeline_mode<synchronous>, transform_indices = @transform_7, window_bounds = array<i64: 8, 16>}, {pipeline_mode = #tpu.pipeline_mode<synchronous>, transform_indices = @transform_8, window_bounds = array<i64: 8, 1>}, {transform_indices = @transform_9, window_bounds = array<i64: 512, 8>}]} {
    %c0 = arith.constant 0 : index
    %c0_0 = arith.constant 0 : index
    %0 = vector.load %arg1[%c0, %c0_0] : memref<512x16xf32, #tpu.memory_space<vmem>>, vector<512x16xf32>
    %1 = tpu.transpose %0, [1, 0] : vector<512x16xf32> -> vector<16x512xf32>
    %c0_1 = arith.constant 0 : index
    %c0_2 = arith.constant 0 : index
    %2 = vector.load %arg2[%c0_1, %c0_2] : memref<64x16xf32, #tpu.memory_space<vmem>>, vector<64x16xf32>
    %cst = arith.constant dense<0.000000e+00> : vector<64x512xf32>
    %3 = tpu.matmul %2, %1, %cst {dimension_numbers = #tpu.dot_dimension_numbers<[1], [0], [0], [1], [0, 0, 1, 1], [], []>} : vector<64x16xf32>, vector<16x512xf32>, vector<64x512xf32> -> vector<64x512xf32>
    %c0_3 = arith.constant 0 : index
    %c0_4 = arith.constant 0 : index
    %4 = vector.load %arg3[%c0_3, %c0_4] : memref<64x1xf32, #tpu.memory_space<vmem>>, vector<64x1xf32>
    %5 = vector.broadcast %4 : vector<64x1xf32> to vector<64x512xf32>
    %6 = arith.addf %3, %5 : vector<64x512xf32>
    %cst_5 = arith.constant 5.000000e-01 : f32
    %7 = vector.broadcast %cst_5 : f32 to vector<64x512xf32>
    %8 = arith.mulf %7, %6 : vector<64x512xf32>
    %cst_6 = arith.constant 0.707106769 : f32
    %9 = vector.broadcast %cst_6 : f32 to vector<64x512xf32>
    %10 = arith.mulf %6, %9 : vector<64x512xf32>
    %11 = math.erf %10 : vector<64x512xf32>
    %cst_7 = arith.constant 1.000000e+00 : f32
    %12 = vector.broadcast %cst_7 : f32 to vector<64x512xf32>
    %13 = arith.addf %12, %11 : vector<64x512xf32>
    %14 = arith.mulf %8, %13 : vector<64x512xf32>
    %c0_8 = arith.constant 0 : index
    %c0_9 = arith.constant 0 : index
    %15 = vector.load %arg4[%c0_8, %c0_9] : memref<32x64xf32, #tpu.memory_space<vmem>>, vector<32x64xf32>
    %c0_10 = arith.constant 0 : index
    %c0_11 = arith.constant 0 : index
    %16 = vector.load %arg5[%c0_10, %c0_11] : memref<32x16xf32, #tpu.memory_space<vmem>>, vector<32x16xf32>
    %c0_12 = arith.constant 0 : index
    %c0_13 = arith.constant 0 : index
    %17 = vector.load %arg6[%c0_12, %c0_13] : memref<32x1xf32, #tpu.memory_space<vmem>>, vector<32x1xf32>
    %cst_14 = arith.constant dense<0.000000e+00> : vector<32x512xf32>
    %18 = tpu.matmul %15, %14, %cst_14 {dimension_numbers = #tpu.dot_dimension_numbers<[1], [0], [0], [1], [0, 0, 1, 1], [], []>} : vector<32x64xf32>, vector<64x512xf32>, vector<32x512xf32> -> vector<32x512xf32>
    %cst_15 = arith.constant dense<0.000000e+00> : vector<32x512xf32>
    %19 = tpu.matmul %16, %1, %cst_15 {dimension_numbers = #tpu.dot_dimension_numbers<[1], [0], [0], [1], [0, 0, 1, 1], [], []>} : vector<32x16xf32>, vector<16x512xf32>, vector<32x512xf32> -> vector<32x512xf32>
    %20 = arith.addf %18, %19 : vector<32x512xf32>
    %21 = vector.broadcast %17 : vector<32x1xf32> to vector<32x512xf32>
    %22 = arith.addf %20, %21 : vector<32x512xf32>
    %cst_16 = arith.constant 5.000000e-01 : f32
    %23 = vector.broadcast %cst_16 : f32 to vector<32x512xf32>
    %24 = arith.mulf %23, %22 : vector<32x512xf32>
    %cst_17 = arith.constant 0.707106769 : f32
    %25 = vector.broadcast %cst_17 : f32 to vector<32x512xf32>
    %26 = arith.mulf %22, %25 : vector<32x512xf32>
    %27 = math.erf %26 : vector<32x512xf32>
    %cst_18 = arith.constant 1.000000e+00 : f32
    %28 = vector.broadcast %cst_18 : f32 to vector<32x512xf32>
    %29 = arith.addf %28, %27 : vector<32x512xf32>
    %30 = arith.mulf %24, %29 : vector<32x512xf32>
    %c0_19 = arith.constant 0 : index
    %c0_20 = arith.constant 0 : index
    %31 = vector.load %arg7[%c0_19, %c0_20] : memref<8x32xf32, #tpu.memory_space<vmem>>, vector<8x32xf32>
    %c0_21 = arith.constant 0 : index
    %c0_22 = arith.constant 0 : index
    %32 = vector.load %arg8[%c0_21, %c0_22] : memref<8x16xf32, #tpu.memory_space<vmem>>, vector<8x16xf32>
    %c0_23 = arith.constant 0 : index
    %c0_24 = arith.constant 0 : index
    %33 = vector.load %arg9[%c0_23, %c0_24] : memref<8x1xf32, #tpu.memory_space<vmem>>, vector<8x1xf32>
    %cst_25 = arith.constant dense<0.000000e+00> : vector<8x512xf32>
    %34 = tpu.matmul %31, %30, %cst_25 {dimension_numbers = #tpu.dot_dimension_numbers<[1], [0], [0], [1], [0, 0, 1, 1], [], []>} : vector<8x32xf32>, vector<32x512xf32>, vector<8x512xf32> -> vector<8x512xf32>
    %cst_26 = arith.constant dense<0.000000e+00> : vector<8x512xf32>
    %35 = tpu.matmul %32, %1, %cst_26 {dimension_numbers = #tpu.dot_dimension_numbers<[1], [0], [0], [1], [0, 0, 1, 1], [], []>} : vector<8x16xf32>, vector<16x512xf32>, vector<8x512xf32> -> vector<8x512xf32>
    %36 = arith.addf %34, %35 : vector<8x512xf32>
    %37 = vector.broadcast %33 : vector<8x1xf32> to vector<8x512xf32>
    %38 = arith.addf %36, %37 : vector<8x512xf32>
    %39 = tpu.transpose %38, [1, 0] : vector<8x512xf32> -> vector<512x8xf32>
    %c0_27 = arith.constant 0 : index
    %c0_28 = arith.constant 0 : index
    %40 = vector.load %arg10[%c0_27, %c0_28] : memref<512x8xf32, #tpu.memory_space<vmem>>, vector<512x8xf32>
    tpu.vector_store %arg10[%c0_27, %c0_28], %39 {strides = array<i32>} : memref<512x8xf32, #tpu.memory_space<vmem>>, vector<512x8xf32>,
    return
  }
  func.func @transform_0(%arg0: i32) -> (i32, i32) {
    %c0_i32 = arith.constant 0 : i32
    %c0_i32_0 = arith.constant 0 : i32
    return %arg0, %c0_i32 : i32, i32
  }
  func.func @transform_1(%arg0: i32) -> (i32, i32) {
    %c0_i32 = arith.constant 0 : i32
    %c0_i32_0 = arith.constant 0 : i32
    %c0_i32_1 = arith.constant 0 : i32
    return %c0_i32, %c0_i32_0 : i32, i32
  }
  func.func @transform_2(%arg0: i32) -> (i32, i32) {
    %c0_i32 = arith.constant 0 : i32
    %c0_i32_0 = arith.constant 0 : i32
    %c0_i32_1 = arith.constant 0 : i32
    return %c0_i32, %c0_i32_0 : i32, i32
  }
  func.func @transform_3(%arg0: i32) -> (i32, i32) {
    %c0_i32 = arith.constant 0 : i32
    %c0_i32_0 = arith.constant 0 : i32
    %c0_i32_1 = arith.constant 0 : i32
    return %c0_i32, %c0_i32_0 : i32, i32
  }
  func.func @transform_4(%arg0: i32) -> (i32, i32) {
    %c0_i32 = arith.constant 0 : i32
    %c0_i32_0 = arith.constant 0 : i32
    %c0_i32_1 = arith.constant 0 : i32
    return %c0_i32, %c0_i32_0 : i32, i32
  }
  func.func @transform_5(%arg0: i32) -> (i32, i32) {
    %c0_i32 = arith.constant 0 : i32
    %c0_i32_0 = arith.constant 0 : i32
    %c0_i32_1 = arith.constant 0 : i32
    return %c0_i32, %c0_i32_0 : i32, i32
  }
  func.func @transform_6(%arg0: i32) -> (i32, i32) {
    %c0_i32 = arith.constant 0 : i32
    %c0_i32_0 = arith.constant 0 : i32
    %c0_i32_1 = arith.constant 0 : i32
    return %c0_i32, %c0_i32_0 : i32, i32
  }
  func.func @transform_7(%arg0: i32) -> (i32, i32) {
    %c0_i32 = arith.constant 0 : i32
    %c0_i32_0 = arith.constant 0 : i32
    %c0_i32_1 = arith.constant 0 : i32
    return %c0_i32, %c0_i32_0 : i32, i32
  }
  func.func @transform_8(%arg0: i32) -> (i32, i32) {
    %c0_i32 = arith.constant 0 : i32
    %c0_i32_0 = arith.constant 0 : i32
    %c0_i32_1 = arith.constant 0 : i32
    return %c0_i32, %c0_i32_0 : i32, i32
  }
  func.func @transform_9(%arg0: i32) -> (i32, i32) {
    %c0_i32 = arith.constant 0 : i32
    %c0_i32_0 = arith.constant 0 : i32
    return %arg0, %c0_i32 : i32, i32
  }
}

</mosaic_0001>

<llo_original>
// kernel: tpu_custom_call.1
$region0: #{tpu_custom_call.1}
  #allocation0 [shape = 'u32[]', space=smem, size = 0x4, offset = 0x4, fixed_abs, tag = 'smem constant byte address 0x4 - core index']
  #allocation1 [shape = 'u32[144,128]{1,0:T(1,128)}', space=vmem, size = 0x12000, scoped, tag = 'internal scratch']
  %s0 = inlined_call_operand.vmem [shape: f32[512,16], index: 0, kind: input, shape index: {}]
  %s1 = inlined_call_operand.vmem [shape: f32[64,16], index: 1, kind: input, shape index: {}]
  %s2 = inlined_call_operand.vmem [shape: f32[64,1], index: 2, kind: input, shape index: {}]
  %s3 = inlined_call_operand.vmem [shape: f32[32,64], index: 3, kind: input, shape index: {}]
  %s4 = inlined_call_operand.vmem [shape: f32[32,16], index: 4, kind: input, shape index: {}]
  %s5 = inlined_call_operand.vmem [shape: f32[32,1], index: 5, kind: input, shape index: {}]
  %s6 = inlined_call_operand.vmem [shape: f32[8,32], index: 6, kind: input, shape index: {}]
  %s7 = inlined_call_operand.vmem [shape: f32[8,16], index: 7, kind: input, shape index: {}]
  %s8 = inlined_call_operand.vmem [shape: f32[8,1], index: 8, kind: input, shape index: {}]
  %s9 = inlined_call_operand.vmem [shape: f32[512,8], index: 9, kind: output, shape index: {}]
  %s10 = sld [smem:[#allocation0]]
  $region46: #{tpu_custom_call.1} parent=0
    _
  %s12 = ssub.s32 1, %s10
  %s13 = scalar_select 0, %s12, %s10
  // Predicated region
  $region2: #{tpu_custom_call.1} parent=0 // pred_check
    _
  $region3: #{tpu_custom_call.1} parent=0 // pred_check_branch
    %15 = sbr.rel (0) target = $region5
  $region4: #{tpu_custom_call.1} parent=0 // pred_region
    _
  $region5: #{tpu_custom_call.1} parent=0 // pred_fallthru
    _
  // Predicated region
  $region6: #{tpu_custom_call.1} parent=0 // pred_check
    _
  $region7: #{tpu_custom_call.1} parent=0 // pred_check_branch
    %17 = sbr.rel (0) target = $region9
  $region8: #{tpu_custom_call.1} parent=0 // pred_region
    _
  $region9: #{tpu_custom_call.1} parent=0 // pred_fallthru
    _
  // Predicated region
  $region10: #{tpu_custom_call.1} parent=0 // pred_check
    _
  $region11: #{tpu_custom_call.1} parent=0 // pred_check_branch
    %19 = sbr.rel (0) target = $region13
  $region12: #{tpu_custom_call.1} parent=0 // pred_region
    _
  $region13: #{tpu_custom_call.1} parent=0 // pred_fallthru
    _
  // Predicated region
  $region14: #{tpu_custom_call.1} parent=0 // pred_check
    _
  $region15: #{tpu_custom_call.1} parent=0 // pred_check_branch
    %21 = sbr.rel (0) target = $region17
  $region16: #{tpu_custom_call.1} parent=0 // pred_region
    _
  $region17: #{tpu_custom_call.1} parent=0 // pred_fallthru
    _
  // Predicated region
  $region18: #{tpu_custom_call.1} parent=0 // pred_check
    _
  $region19: #{tpu_custom_call.1} parent=0 // pred_check_branch
    %23 = sbr.rel (0) target = $region21
  $region20: #{tpu_custom_call.1} parent=0 // pred_region
    _
  $region21: #{tpu_custom_call.1} parent=0 // pred_fallthru
    _
  // Predicated region
  $region22: #{tpu_custom_call.1} parent=0 // pred_check
    _
  $region23: #{tpu_custom_call.1} parent=0 // pred_check_branch
    %25 = sbr.rel (0) target = $region25
  $region24: #{tpu_custom_call.1} parent=0 // pred_region
    _
  $region25: #{tpu_custom_call.1} parent=0 // pred_fallthru
    _
  // Predicated region
  $region26: #{tpu_custom_call.1} parent=0 // pred_check
    _
  $region27: #{tpu_custom_call.1} parent=0 // pred_check_branch
    %27 = sbr.rel (0) target = $region29
  $region28: #{tpu_custom_call.1} parent=0 // pred_region
    _
  $region29: #{tpu_custom_call.1} parent=0 // pred_fallthru
    _
  // Predicated region
  $region30: #{tpu_custom_call.1} parent=0 // pred_check
    _
  $region31: #{tpu_custom_call.1} parent=0 // pred_check_branch
    %29 = sbr.rel (0) target = $region33
  $region32: #{tpu_custom_call.1} parent=0 // pred_region
    _
  $region33: #{tpu_custom_call.1} parent=0 // pred_fallthru
    _
  // Predicated region
  $region34: #{tpu_custom_call.1} parent=0 // pred_check
    _
  $region35: #{tpu_custom_call.1} parent=0 // pred_check_branch
    %31 = sbr.rel (0) target = $region37
  $region36: #{tpu_custom_call.1} parent=0 // pred_region
    _
  $region37: #{tpu_custom_call.1} parent=0 // pred_fallthru
    _
  %v32 = vld [vmem:[%s0] sm:$0xff]
  %v33 = vld [vmem:[%s0 + $0x8] sm:$0xff]
  %v34 = vld [vmem:[%s0 + $0x10] sm:$0xff]
  %v35 = vld [vmem:[%s0 + $0x18] sm:$0xff]
  %v36 = vld [vmem:[%s0 + $0x20] sm:$0xff]
  %v37 = vld [vmem:[%s0 + $0x28] sm:$0xff]
  %v38 = vld [vmem:[%s0 + $0x30] sm:$0xff]
  %v39 = vld [vmem:[%s0 + $0x38] sm:$0xff]
  %v40 = vld [vmem:[%s0 + $0x40] sm:$0xff]
  %v41 = vld [vmem:[%s0 + $0x48] sm:$0xff]
  %v42 = vld [vmem:[%s0 + $0x50] sm:$0xff]
  %v43 = vld [vmem:[%s0 + $0x58] sm:$0xff]
  %v44 = vld [vmem:[%s0 + $0x60] sm:$0xff]
  %v45 = vld [vmem:[%s0 + $0x68] sm:$0xff]
  %v46 = vld [vmem:[%s0 + $0x70] sm:$0xff]
  %v47 = vld [vmem:[%s0 + $0x78] sm:$0xff]
  %v48 = vld [vmem:[%s0 + $0x80] sm:$0xff]
  %v49 = vld [vmem:[%s0 + $0x88] sm:$0xff]
  %v50 = vld [vmem:[%s0 + $0x90] sm:$0xff]
  %v51 = vld [vmem:[%s0 + $0x98] sm:$0xff]
  %v52 = vld [vmem:[%s0 + $0xa0] sm:$0xff]
  %v53 = vld [vmem:[%s0 + $0xa8] sm:$0xff]
  %v54 = vld [vmem:[%s0 + $0xb0] sm:$0xff]
  %v55 = vld [vmem:[%s0 + $0xb8] sm:$0xff]
  %v56 = vld [vmem:[%s0 + $0xc0] sm:$0xff]
  %v57 = vld [vmem:[%s0 + $0xc8] sm:$0xff]
  %v58 = vld [vmem:[%s0 + $0xd0] sm:$0xff]
  %v59 = vld [vmem:[%s0 + $0xd8] sm:$0xff]
  %v60 = vld [vmem:[%s0 + $0xe0] sm:$0xff]
  %v61 = vld [vmem:[%s0 + $0xe8] sm:$0xff]
  %v62 = vld [vmem:[%s0 + $0xf0] sm:$0xff]
  %v63 = vld [vmem:[%s0 + $0xf8] sm:$0xff]
  %v64 = vld [vmem:[%s0 + $0x100] sm:$0xff]
  %v65 = vld [vmem:[%s0 + $0x108] sm:$0xff]
  %v66 = vld [vmem:[%s0 + $0x110] sm:$0xff]
  %v67 = vld [vmem:[%s0 + $0x118] sm:$0xff]
  %v68 = vld [vmem:[%s0 + $0x120] sm:$0xff]
  %v69 = vld [vmem:[%s0 + $0x128] sm:$0xff]
  %v70 = vld [vmem:[%s0 + $0x130] sm:$0xff]
  %v71 = vld [vmem:[%s0 + $0x138] sm:$0xff]
  %v72 = vld [vmem:[%s0 + $0x140] sm:$0xff]
  %v73 = vld [vmem:[%s0 + $0x148] sm:$0xff]
  %v74 = vld [vmem:[%s0 + $0x150] sm:$0xff]
  %v75 = vld [vmem:[%s0 + $0x158] sm:$0xff]
  %v76 = vld [vmem:[%s0 + $0x160] sm:$0xff]
  %v77 = vld [vmem:[%s0 + $0x168] sm:$0xff]
  %v78 = vld [vmem:[%s0 + $0x170] sm:$0xff]
  %v79 = vld [vmem:[%s0 + $0x178] sm:$0xff]
  %v80 = vld [vmem:[%s0 + $0x180] sm:$0xff]
  %v81 = vld [vmem:[%s0 + $0x188] sm:$0xff]
  %v82 = vld [vmem:[%s0 + $0x190] sm:$0xff]
  %v83 = vld [vmem:[%s0 + $0x198] sm:$0xff]
  %v84 = vld [vmem:[%s0 + $0x1a0] sm:$0xff]
  %v85 = vld [vmem:[%s0 + $0x1a8] sm:$0xff]
  %v86 = vld [vmem:[%s0 + $0x1b0] sm:$0xff]
  %v87 = vld [vmem:[%s0 + $0x1b8] sm:$0xff]
  %v88 = vld [vmem:[%s0 + $0x1c0] sm:$0xff]
  %v89 = vld [vmem:[%s0 + $0x1c8] sm:$0xff]
  %v90 = vld [vmem:[%s0 + $0x1d0] sm:$0xff]
  %v91 = vld [vmem:[%s0 + $0x1d8] sm:$0xff]
  %v92 = vld [vmem:[%s0 + $0x1e0] sm:$0xff]
  %v93 = vld [vmem:[%s0 + $0x1e8] sm:$0xff]
  %v94 = vld [vmem:[%s0 + $0x1f0] sm:$0xff]
  %v95 = vld [vmem:[%s0 + $0x1f8] sm:$0xff]
  %v96 = vld [vmem:[%s1] sm:$0xff]
  %v97 = vld [vmem:[%s1 + $0x8] sm:$0xff]
  %v98 = vld [vmem:[%s1 + $0x10] sm:$0xff]
  %v99 = vld [vmem:[%s1 + $0x18] sm:$0xff]
  %v100 = vld [vmem:[%s1 + $0x20] sm:$0xff]
  %v101 = vld [vmem:[%s1 + $0x28] sm:$0xff]
  %v102 = vld [vmem:[%s1 + $0x30] sm:$0xff]
  %v103 = vld [vmem:[%s1 + $0x38] sm:$0xff]
  %v104 = vld [vmem:[%s2] sm:$0xff]
  %v105 = vld [vmem:[%s2 + $0x8] sm:$0xff]
  %v106 = vld [vmem:[%s2 + $0x10] sm:$0xff]
  %v107 = vld [vmem:[%s2 + $0x18] sm:$0xff]
  %v108 = vld [vmem:[%s2 + $0x20] sm:$0xff]
  %v109 = vld [vmem:[%s2 + $0x28] sm:$0xff]
  %v110 = vld [vmem:[%s2 + $0x30] sm:$0xff]
  %v111 = vld [vmem:[%s2 + $0x38] sm:$0xff]
  %113 = vset.pattern.permute.xlu0 0
  %114 = vperm.xlu0 %113, %v104
  %v115 = vpop.permute.xlu0 %114
  %118 = vset.pattern.permute.xlu0 0
  %119 = vperm.xlu0 %118, %v105
  %v120 = vpop.permute.xlu0 %119
  %123 = vset.pattern.permute.xlu0 0
  %124 = vperm.xlu0 %123, %v106
  %v125 = vpop.permute.xlu0 %124
  %128 = vset.pattern.permute.xlu0 0
  %129 = vperm.xlu0 %128, %v107
  %v130 = vpop.permute.xlu0 %129
  %133 = vset.pattern.permute.xlu0 0
  %134 = vperm.xlu0 %133, %v108
  %v135 = vpop.permute.xlu0 %134
  %138 = vset.pattern.permute.xlu0 0
  %139 = vperm.xlu0 %138, %v109
  %v140 = vpop.permute.xlu0 %139
  %143 = vset.pattern.permute.xlu0 0
  %144 = vperm.xlu0 %143, %v110
  %v145 = vpop.permute.xlu0 %144
  %148 = vset.pattern.permute.xlu0 0
  %149 = vperm.xlu0 %148, %v111
  %v150 = vpop.permute.xlu0 %149
  %vm152 = vcmask 130048
  %v154 = vsel %vm152, %v96, 0
  %v157 = vsel %vm152, %v97, 0
  %v160 = vsel %vm152, %v98, 0
  %v163 = vsel %vm152, %v99, 0
  %v166 = vsel %vm152, %v100, 0
  %v169 = vsel %vm152, %v101, 0
  %v172 = vsel %vm152, %v102, 0
  %v175 = vsel %vm152, %v103, 0
  %v178 = vsel %vm152, %v32, 0
  %v181 = vsel %vm152, %v33, 0
  %v184 = vsel %vm152, %v34, 0
  %v187 = vsel %vm152, %v35, 0
  %v190 = vsel %vm152, %v36, 0
  %v193 = vsel %vm152, %v37, 0
  %v196 = vsel %vm152, %v38, 0
  %v199 = vsel %vm152, %v39, 0
  %v202 = vsel %vm152, %v40, 0
  %v205 = vsel %vm152, %v41, 0
  %v208 = vsel %vm152, %v42, 0
  %v211 = vsel %vm152, %v43, 0
  %v214 = vsel %vm152, %v44, 0
  %v217 = vsel %vm152, %v45, 0
  %v220 = vsel %vm152, %v46, 0
  %v223 = vsel %vm152, %v47, 0
  %v226 = vsel %vm152, %v48, 0
  %v229 = vsel %vm152, %v49, 0
  %v232 = vsel %vm152, %v50, 0
  %v235 = vsel %vm152, %v51, 0
  %v238 = vsel %vm152, %v52, 0
  %v241 = vsel %vm152, %v53, 0
  %v244 = vsel %vm152, %v54, 0
  %v247 = vsel %vm152, %v55, 0
  %v250 = vsel %vm152, %v56, 0
  %v253 = vsel %vm152, %v57, 0
  %v256 = vsel %vm152, %v58, 0
  %v259 = vsel %vm152, %v59, 0
  %v262 = vsel %vm152, %v60, 0
  %v265 = vsel %vm152, %v61, 0
  %v268 = vsel %vm152, %v62, 0
  %v271 = vsel %vm152, %v63, 0
  %v274 = vsel %vm152, %v64, 0
  %v277 = vsel %vm152, %v65, 0
  %v280 = vsel %vm152, %v66, 0
  %v283 = vsel %vm152, %v67, 0
  %v286 = vsel %vm152, %v68, 0
  %v289 = vsel %vm152, %v69, 0
  %v292 = vsel %vm152, %v70, 0
  %v295 = vsel %vm152, %v71, 0
  %v298 = vsel %vm152, %v72, 0
  %v301 = vsel %vm152, %v73, 0
  %v304 = vsel %vm152, %v74, 0
  %v307 = vsel %vm152, %v75, 0
  %v310 = vsel %vm152, %v76, 0
  %v313 = vsel %vm152, %v77, 0
  %v316 = vsel %vm152, %v78, 0
  %v319 = vsel %vm152, %v79, 0
  %v322 = vsel %vm152, %v80, 0
  %v325 = vsel %vm152, %v81, 0
  %v328 = vsel %vm152, %v82, 0
  %v331 = vsel %vm152, %v83, 0
  %v334 = vsel %vm152, %v84, 0
  %v337 = vsel %vm152, %v85, 0
  %v340 = vsel %vm152, %v86, 0
  %v343 = vsel %vm152, %v87, 0
  %v346 = vsel %vm152, %v88, 0
  %v349 = vsel %vm152, %v89, 0
  %v352 = vsel %vm152, %v90, 0
  %v355 = vsel %vm152, %v91, 0
  %v358 = vsel %vm152, %v92, 0
  %v361 = vsel %vm152, %v93, 0
  %v364 = vsel %vm152, %v94, 0
  %v367 = vsel %vm152, %v95, 0
  %369 = vmatprep.subr.mxu0 0.0
  %370 = vmatpush1.xpose.msra.mxu0 %v178
  %371 = vmatprep.subr.mxu0 0.0
  %372 = vmatpush1.xpose.msra.mxu0 %v181
  %373 = vmatprep.subr.mxu0 0.0
  %374 = vmatpush1.xpose.msra.mxu0 %v184
  %375 = vmatprep.subr.mxu0 0.0
  %376 = vmatpush1.xpose.msra.mxu0 %v187
  %377 = vmatprep.subr.mxu0 0.0
  %378 = vmatpush1.xpose.msra.mxu0 %v190
  %379 = vmatprep.subr.mxu0 0.0
  %380 = vmatpush1.xpose.msra.mxu0 %v193
  %381 = vmatprep.subr.mxu0 0.0
  %382 = vmatpush1.xpose.msra.mxu0 %v196
  %383 = vmatprep.subr.mxu0 0.0
  %384 = vmatpush1.xpose.msra.mxu0 %v199
  %385 = vmatprep.subr.mxu0 0.0
  %386 = vmatpush1.xpose.msra.mxu0 %v202
  %387 = vmatprep.subr.mxu0 0.0
  %388 = vmatpush1.xpose.msra.mxu0 %v205
  %389 = vmatprep.subr.mxu0 0.0
  %390 = vmatpush1.xpose.msra.mxu0 %v208
  %391 = vmatprep.subr.mxu0 0.0
  %392 = vmatpush1.xpose.msra.mxu0 %v211
  %393 = vmatprep.subr.mxu0 0.0
  %394 = vmatpush1.xpose.msra.mxu0 %v214
  %395 = vmatprep.subr.mxu0 0.0
  %396 = vmatpush1.xpose.msra.mxu0 %v217
  %397 = vmatprep.subr.mxu0 0.0
  %398 = vmatpush1.xpose.msra.mxu0 %v220
  %399 = vmatprep.subr.mxu0 0.0
  %400 = vmatpush1.xpose.msra.mxu0 %v223
  %401 = vmatprep.subr.mxu0 0.0
  %402 = vmatpush1.xpose.msra.mxu0 %v226
  %403 = vmatprep.subr.mxu0 0.0
  %404 = vmatpush1.xpose.msra.mxu0 %v229
  %405 = vmatprep.subr.mxu0 0.0
  %406 = vmatpush1.xpose.msra.mxu0 %v232
  %407 = vmatprep.subr.mxu0 0.0
  %408 = vmatpush1.xpose.msra.mxu0 %v235
  %409 = vmatprep.subr.mxu0 0.0
  %410 = vmatpush1.xpose.msra.mxu0 %v238
  %411 = vmatprep.subr.mxu0 0.0
  %412 = vmatpush1.xpose.msra.mxu0 %v241
  %413 = vmatprep.subr.mxu0 0.0
  %414 = vmatpush1.xpose.msra.mxu0 %v244
  %415 = vmatprep.subr.mxu0 0.0
  %416 = vmatpush1.xpose.msra.mxu0 %v247
  %417 = vmatprep.subr.mxu0 0.0
  %418 = vmatpush1.xpose.msra.mxu0 %v250
  %419 = vmatprep.subr.mxu0 0.0
  %420 = vmatpush1.xpose.msra.mxu0 %v253
  %421 = vmatprep.subr.mxu0 0.0
  %422 = vmatpush1.xpose.msra.mxu0 %v256
  %423 = vmatprep.subr.mxu0 0.0
  %424 = vmatpush1.xpose.msra.mxu0 %v259
  %425 = vmatprep.subr.mxu0 0.0
  %426 = vmatpush1.xpose.msra.mxu0 %v262
  %427 = vmatprep.subr.mxu0 0.0
  %428 = vmatpush1.xpose.msra.mxu0 %v265
  %429 = vmatprep.subr.mxu0 0.0
  %430 = vmatpush1.xpose.msra.mxu0 %v268
  %431 = vmatprep.subr.mxu0 0.0
  %432 = vmatpush1.xpose.msra.mxu0 %v271
  %433 = vmatprep.mubr.f32.mxu0 0.0
  %434 = vmatmul.mubr.f32.gmra.mrb[0].mxu0 %v154
  %v435 = vpop.f32.mrb[0].mxu0
  %v436 = vadd.f32 %v115, %v435
  %v437 = vpop.f32.mrb[0].mxu0
  %v438 = vadd.f32 %v115, %v437
  %439 = vmatprep.mubr.f32.mxu0 0.0
  %440 = vmatmul.mubr.f32.gmra.mrb[0].mxu0 %v157
  %v441 = vpop.f32.mrb[0].mxu0
  %v442 = vadd.f32 %v120, %v441
  %v443 = vpop.f32.mrb[0].mxu0
  %v444 = vadd.f32 %v120, %v443
  %445 = vmatprep.mubr.f32.mxu0 0.0
  %446 = vmatmul.mubr.f32.gmra.mrb[0].mxu0 %v160
  %v447 = vpop.f32.mrb[0].mxu0
  %v448 = vadd.f32 %v125, %v447
  %v449 = vpop.f32.mrb[0].mxu0
  %v450 = vadd.f32 %v125, %v449
  %451 = vmatprep.mubr.f32.mxu0 0.0
  %452 = vmatmul.mubr.f32.gmra.mrb[0].mxu0 %v163
  %v453 = vpop.f32.mrb[0].mxu0
  %v454 = vadd.f32 %v130, %v453
  %v455 = vpop.f32.mrb[0].mxu0
  %v456 = vadd.f32 %v130, %v455
  %457 = vmatprep.mubr.f32.mxu0 0.0
  %458 = vmatmul.mubr.f32.gmra.mrb[0].mxu0 %v166
  %v459 = vpop.f32.mrb[0].mxu0
  %v460 = vadd.f32 %v135, %v459
  %v461 = vpop.f32.mrb[0].mxu0
  %v462 = vadd.f32 %v135, %v461
  %463 = vmatprep.mubr.f32.mxu0 0.0
  %464 = vmatmul.mubr.f32.gmra.mrb[0].mxu0 %v169
  %v465 = vpop.f32.mrb[0].mxu0
  %v466 = vadd.f32 %v140, %v465
  %v467 = vpop.f32.mrb[0].mxu0
  %v468 = vadd.f32 %v140, %v467
  %469 = vmatprep.mubr.f32.mxu0 0.0
  %470 = vmatmul.mubr.f32.gmra.mrb[0].mxu0 %v172
  %v471 = vpop.f32.mrb[0].mxu0
  %v472 = vadd.f32 %v145, %v471
  %v473 = vpop.f32.mrb[0].mxu0
  %v474 = vadd.f32 %v145, %v473
  %475 = vmatprep.mubr.f32.mxu0 0.0
  %476 = vmatmul.mubr.f32.gmra.mrb[0].mxu0 %v175
  %v477 = vpop.f32.mrb[0].mxu0
  %v478 = vadd.f32 %v150, %v477
  %v479 = vpop.f32.mrb[0].mxu0
  %v480 = vadd.f32 %v150, %v479
  %481 = vdwg.mxu0
  %482 = vmatprep.subr.mxu0 0.0
  %483 = vmatpush1.xpose.msra.mxu0 %v274
  %484 = vmatprep.subr.mxu0 0.0
  %485 = vmatpush1.xpose.msra.mxu0 %v277
  %486 = vmatprep.subr.mxu0 0.0
  %487 = vmatpush1.xpose.msra.mxu0 %v280
  %488 = vmatprep.subr.mxu0 0.0
  %489 = vmatpush1.xpose.msra.mxu0 %v283
  %490 = vmatprep.subr.mxu0 0.0
  %491 = vmatpush1.xpose.msra.mxu0 %v286
  %492 = vmatprep.subr.mxu0 0.0
  %493 = vmatpush1.xpose.msra.mxu0 %v289
  %494 = vmatprep.subr.mxu0 0.0
  %495 = vmatpush1.xpose.msra.mxu0 %v292
  %496 = vmatprep.subr.mxu0 0.0
  %497 = vmatpush1.xpose.msra.mxu0 %v295
  %498 = vmatprep.subr.mxu0 0.0
  %499 = vmatpush1.xpose.msra.mxu0 %v298
  %500 = vmatprep.subr.mxu0 0.0
  %501 = vmatpush1.xpose.msra.mxu0 %v301
  %502 = vmatprep.subr.mxu0 0.0
  %503 = vmatpush1.xpose.msra.mxu0 %v304
  %504 = vmatprep.subr.mxu0 0.0
  %505 = vmatpush1.xpose.msra.mxu0 %v307
  %506 = vmatprep.subr.mxu0 0.0
  %507 = vmatpush1.xpose.msra.mxu0 %v310
  %508 = vmatprep.subr.mxu0 0.0
  %509 = vmatpush1.xpose.msra.mxu0 %v313
  %510 = vmatprep.subr.mxu0 0.0
  %511 = vmatpush1.xpose.msra.mxu0 %v316
  %512 = vmatprep.subr.mxu0 0.0
  %513 = vmatpush1.xpose.msra.mxu0 %v319
  %514 = vmatprep.subr.mxu0 0.0
  %515 = vmatpush1.xpose.msra.mxu0 %v322
  %516 = vmatprep.subr.mxu0 0.0
  %517 = vmatpush1.xpose.msra.mxu0 %v325
  %518 = vmatprep.subr.mxu0 0.0
  %519 = vmatpush1.xpose.msra.mxu0 %v328
  %520 = vmatprep.subr.mxu0 0.0
  %521 = vmatpush1.xpose.msra.mxu0 %v331
  %522 = vmatprep.subr.mxu0 0.0
  %523 = vmatpush1.xpose.msra.mxu0 %v334
  %524 = vmatprep.subr.mxu0 0.0
  %525 = vmatpush1.xpose.msra.mxu0 %v337
  %526 = vmatprep.subr.mxu0 0.0
  %527 = vmatpush1.xpose.msra.mxu0 %v340
  %528 = vmatprep.subr.mxu0 0.0
  %529 = vmatpush1.xpose.msra.mxu0 %v343
  %530 = vmatprep.subr.mxu0 0.0
  %531 = vmatpush1.xpose.msra.mxu0 %v346
  %532 = vmatprep.subr.mxu0 0.0
  %533 = vmatpush1.xpose.msra.mxu0 %v349
  %534 = vmatprep.subr.mxu0 0.0
  %535 = vmatpush1.xpose.msra.mxu0 %v352
  %536 = vmatprep.subr.mxu0 0.0
  %537 = vmatpush1.xpose.msra.mxu0 %v355
  %538 = vmatprep.subr.mxu0 0.0
  %539 = vmatpush1.xpose.msra.mxu0 %v358
  %540 = vmatprep.subr.mxu0 0.0
  %541 = vmatpush1.xpose.msra.mxu0 %v361
  %542 = vmatprep.subr.mxu0 0.0
  %543 = vmatpush1.xpose.msra.mxu0 %v364
  %544 = vmatprep.subr.mxu0 0.0
  %545 = vmatpush1.xpose.msra.mxu0 %v367
  %546 = vmatprep.mubr.f32.mxu0 0.0
  %547 = vmatmul.mubr.f32.gmra.mrb[0].mxu0 %v154
  %v548 = vpop.f32.mrb[0].mxu0
  %v549 = vadd.f32 %v115, %v548
  %v550 = vpop.f32.mrb[0].mxu0
  %v551 = vadd.f32 %v115, %v550
  %552 = vmatprep.mubr.f32.mxu0 0.0
  %553 = vmatmul.mubr.f32.gmra.mrb[0].mxu0 %v157
  %v554 = vpop.f32.mrb[0].mxu0
  %v555 = vadd.f32 %v120, %v554
  %v556 = vpop.f32.mrb[0].mxu0
  %v557 = vadd.f32 %v120, %v556
  %558 = vmatprep.mubr.f32.mxu0 0.0
  %559 = vmatmul.mubr.f32.gmra.mrb[0].mxu0 %v160
  %v560 = vpop.f32.mrb[0].mxu0
  %v561 = vadd.f32 %v125, %v560
  %v562 = vpop.f32.mrb[0].mxu0
  %v563 = vadd.f32 %v125, %v562
  %564 = vmatprep.mubr.f32.mxu0 0.0
  %565 = vmatmul.mubr.f32.gmra.mrb[0].mxu0 %v163
  %v566 = vpop.f32.mrb[0].mxu0
  %v567 = vadd.f32 %v130, %v566
  %v568 = vpop.f32.mrb[0].mxu0
  %v569 = vadd.f32 %v130, %v568
  %570 = vmatprep.mubr.f32.mxu0 0.0
  %571 = vmatmul.mubr.f32.gmra.mrb[0].mxu0 %v166
  %v572 = vpop.f32.mrb[0].mxu0
  %v573 = vadd.f32 %v135, %v572
  %v574 = vpop.f32.mrb[0].mxu0
  %v575 = vadd.f32 %v135, %v574
  %576 = vmatprep.mubr.f32.mxu0 0.0
  %577 = vmatmul.mubr.f32.gmra.mrb[0].mxu0 %v169
  %v578 = vpop.f32.mrb[0].mxu0
  %v579 = vadd.f32 %v140, %v578
  %v580 = vpop.f32.mrb[0].mxu0
  %v581 = vadd.f32 %v140, %v580
  %582 = vmatprep.mubr.f32.mxu0 0.0
  %583 = vmatmul.mubr.f32.gmra.mrb[0].mxu0 %v172
  %v584 = vpop.f32.mrb[0].mxu0
  %v585 = vadd.f32 %v145, %v584
  %v586 = vpop.f32.mrb[0].mxu0
  %v587 = vadd.f32 %v145, %v586
  %588 = vmatprep.mubr.f32.mxu0 0.0
  %589 = vmatmul.mubr.f32.gmra.mrb[0].mxu0 %v175
  %v590 = vpop.f32.mrb[0].mxu0
  %v591 = vadd.f32 %v150, %v590
  %v592 = vpop.f32.mrb[0].mxu0
  %v593 = vadd.f32 %v150, %v592
  %594 = vdwg.mxu0
  %v595 = vmul.f32 %v436, 0.5
  %v596 = vmul.f32 %v438, 0.5
  %v597 = vmul.f32 %v549, 0.5
  %v598 = vmul.f32 %v551, 0.5
  %v599 = vmul.f32 %v442, 0.5
  %v600 = vmul.f32 %v444, 0.5
  %v601 = vmul.f32 %v555, 0.5
  %v602 = vmul.f32 %v557, 0.5
  %v603 = vmul.f32 %v448, 0.5
  %v604 = vmul.f32 %v450, 0.5
  %v605 = vmul.f32 %v561, 0.5
  %v606 = vmul.f32 %v563, 0.5
  %v607 = vmul.f32 %v454, 0.5
  %v608 = vmul.f32 %v456, 0.5
  %v609 = vmul.f32 %v567, 0.5
  %v610 = vmul.f32 %v569, 0.5
  %v611 = vmul.f32 %v460, 0.5
  %v612 = vmul.f32 %v462, 0.5
  %v613 = vmul.f32 %v573, 0.5
  %v614 = vmul.f32 %v575, 0.5
  %v615 = vmul.f32 %v466, 0.5
  %v616 = vmul.f32 %v468, 0.5
  %v617 = vmul.f32 %v579, 0.5
  %v618 = vmul.f32 %v581, 0.5
  %v619 = vmul.f32 %v472, 0.5
  %v620 = vmul.f32 %v474, 0.5
  %v621 = vmul.f32 %v585, 0.5
  %v622 = vmul.f32 %v587, 0.5
  %v623 = vmul.f32 %v478, 0.5
  %v624 = vmul.f32 %v480, 0.5
  %v625 = vmul.f32 %v591, 0.5
  %v626 = vmul.f32 %v593, 0.5
  %v627 = vmul.f32 %v436, 0.70710677
  %v628 = vmul.f32 %v438, 0.70710677
  %v629 = vmul.f32 %v549, 0.70710677
  %v630 = vmul.f32 %v551, 0.70710677
  %v631 = vmul.f32 %v442, 0.70710677
  %v632 = vmul.f32 %v444, 0.70710677
  %v633 = vmul.f32 %v555, 0.70710677
  %v634 = vmul.f32 %v557, 0.70710677
  %v635 = vmul.f32 %v448, 0.70710677
  %v636 = vmul.f32 %v450, 0.70710677
  %v637 = vmul.f32 %v561, 0.70710677
  %v638 = vmul.f32 %v563, 0.70710677
  %v639 = vmul.f32 %v454, 0.70710677
  %v640 = vmul.f32 %v456, 0.70710677
  %v641 = vmul.f32 %v567, 0.70710677
  %v642 = vmul.f32 %v569, 0.70710677
  %v643 = vmul.f32 %v460, 0.70710677
  %v644 = vmul.f32 %v462, 0.70710677
  %v645 = vmul.f32 %v573, 0.70710677
  %v646 = vmul.f32 %v575, 0.70710677
  %v647 = vmul.f32 %v466, 0.70710677
  %v648 = vmul.f32 %v468, 0.70710677
  %v649 = vmul.f32 %v579, 0.70710677
  %v650 = vmul.f32 %v581, 0.70710677
  %v651 = vmul.f32 %v472, 0.70710677
  %v652 = vmul.f32 %v474, 0.70710677
  %v653 = vmul.f32 %v585, 0.70710677
  %v654 = vmul.f32 %v587, 0.70710677
  %v655 = vmul.f32 %v478, 0.70710677
  %v656 = vmul.f32 %v480, 0.70710677
  %v657 = vmul.f32 %v591, 0.70710677
  %v658 = vmul.f32 %v593, 0.70710677
  %v659 = verf.f32.pop %v627
  %v660 = verf.f32.pop %v628
  %v661 = verf.f32.pop %v629
  %v662 = verf.f32.pop %v630
  %v663 = verf.f32.pop %v631
  %v664 = verf.f32.pop %v632
  %v665 = verf.f32.pop %v633
  %v666 = verf.f32.pop %v634
  %v667 = verf.f32.pop %v635
  %v668 = verf.f32.pop %v636
  %v669 = verf.f32.pop %v637
  %v670 = verf.f32.pop %v638
  %v671 = verf.f32.pop %v639
  %v672 = verf.f32.pop %v640
  %v673 = verf.f32.pop %v641
  %v674 = verf.f32.pop %v642
  %v675 = verf.f32.pop %v643
  %v676 = verf.f32.pop %v644
  %v677 = verf.f32.pop %v645
  %v678 = verf.f32.pop %v646
  %v679 = verf.f32.pop %v647
  %v680 = verf.f32.pop %v648
  %v681 = verf.f32.pop %v649
  %v682 = verf.f32.pop %v650
  %v683 = verf.f32.pop %v651
  %v684 = verf.f32.pop %v652
  %v685 = verf.f32.pop %v653
  %v686 = verf.f32.pop %v654
  %v687 = verf.f32.pop %v655
  %v688 = verf.f32.pop %v656
  %v689 = verf.f32.pop %v657
  %v690 = verf.f32.pop %v658
  %v691 = vadd.f32 %v659, 1.0
  %v692 = vadd.f32 %v660, 1.0
  %v693 = vadd.f32 %v661, 1.0
  %v694 = vadd.f32 %v662, 1.0
  %v695 = vadd.f32 %v663, 1.0
  %v696 = vadd.f32 %v664, 1.0
  %v697 = vadd.f32 %v665, 1.0
  %v698 = vadd.f32 %v666, 1.0
  %v699 = vadd.f32 %v667, 1.0
  %v700 = vadd.f32 %v668, 1.0
  %v701 = vadd.f32 %v669, 1.0
  %v702 = vadd.f32 %v670, 1.0
  %v703 = vadd.f32 %v671, 1.0
  %v704 = vadd.f32 %v672, 1.0
  %v705 = vadd.f32 %v673, 1.0
  %v706 = vadd.f32 %v674, 1.0
  %v707 = vadd.f32 %v675, 1.0
  %v708 = vadd.f32 %v676, 1.0
  %v709 = vadd.f32 %v677, 1.0
  %v710 = vadd.f32 %v678, 1.0
  %v711 = vadd.f32 %v679, 1.0
  %v712 = vadd.f32 %v680, 1.0
  %v713 = vadd.f32 %v681, 1.0
  %v714 = vadd.f32 %v682, 1.0
  %v715 = vadd.f32 %v683, 1.0
  %v716 = vadd.f32 %v684, 1.0
  %v717 = vadd.f32 %v685, 1.0
  %v718 = vadd.f32 %v686, 1.0
  %v719 = vadd.f32 %v687, 1.0
  %v720 = vadd.f32 %v688, 1.0
  %v721 = vadd.f32 %v689, 1.0
  %v722 = vadd.f32 %v690, 1.0
  %v723 = vmul.f32 %v595, %v691
  %v724 = vmul.f32 %v596, %v692
  %v725 = vmul.f32 %v597, %v693
  %v726 = vmul.f32 %v598, %v694
  %v727 = vmul.f32 %v599, %v695
  %v728 = vmul.f32 %v600, %v696
  %v729 = vmul.f32 %v601, %v697
  %v730 = vmul.f32 %v602, %v698
  %v731 = vmul.f32 %v603, %v699
  %v732 = vmul.f32 %v604, %v700
  %v733 = vmul.f32 %v605, %v701
  %v734 = vmul.f32 %v606, %v702
  %v735 = vmul.f32 %v607, %v703
  %v736 = vmul.f32 %v608, %v704
  %v737 = vmul.f32 %v609, %v705
  %v738 = vmul.f32 %v610, %v706
  %v739 = vmul.f32 %v611, %v707
  %v740 = vmul.f32 %v612, %v708
  %v741 = vmul.f32 %v613, %v709
  %v742 = vmul.f32 %v614, %v710
  %v743 = vmul.f32 %v615, %v711
  %v744 = vmul.f32 %v616, %v712
  %v745 = vmul.f32 %v617, %v713
  %v746 = vmul.f32 %v618, %v714
  %v747 = vmul.f32 %v619, %v715
  %v748 = vmul.f32 %v620, %v716
  %v749 = vmul.f32 %v621, %v717
  %v750 = vmul.f32 %v622, %v718
  %v751 = vmul.f32 %v623, %v719
  %v752 = vmul.f32 %v624, %v720
  %v753 = vmul.f32 %v625, %v721
  %v754 = vmul.f32 %v626, %v722
  %v755 = vld [vmem:[%s3] sm:$0xff]
  %v756 = vld [vmem:[%s3 + $0x8] sm:$0xff]
  %v757 = vld [vmem:[%s3 + $0x10] sm:$0xff]
  %v758 = vld [vmem:[%s3 + $0x18] sm:$0xff]
  %v759 = vld [vmem:[%s4] sm:$0xff]
  %v760 = vld [vmem:[%s4 + $0x8] sm:$0xff]
  %v761 = vld [vmem:[%s4 + $0x10] sm:$0xff]
  %v762 = vld [vmem:[%s4 + $0x18] sm:$0xff]
  %v763 = vld [vmem:[%s5] sm:$0xff]
  %v764 = vld [vmem:[%s5 + $0x8] sm:$0xff]
  %v765 = vld [vmem:[%s5 + $0x10] sm:$0xff]
  %v766 = vld [vmem:[%s5 + $0x18] sm:$0xff]
  %v768 = vsel %vm152, %v759, 0
  %v771 = vsel %vm152, %v760, 0
  %v774 = vsel %vm152, %v761, 0
  %v777 = vsel %vm152, %v762, 0
  %779 = vmatprep.subr.mxu0 0.0
  %780 = vmatpush1.xpose.msra.mxu0 %v178
  %781 = vmatprep.subr.mxu0 0.0
  %782 = vmatpush1.xpose.msra.mxu0 %v181
  %783 = vmatprep.subr.mxu0 0.0
  %784 = vmatpush1.xpose.msra.mxu0 %v184
  %785 = vmatprep.subr.mxu0 0.0
  %786 = vmatpush1.xpose.msra.mxu0 %v187
  %787 = vmatprep.subr.mxu0 0.0
  %788 = vmatpush1.xpose.msra.mxu0 %v190
  %789 = vmatprep.subr.mxu0 0.0
  %790 = vmatpush1.xpose.msra.mxu0 %v193
  %791 = vmatprep.subr.mxu0 0.0
  %792 = vmatpush1.xpose.msra.mxu0 %v196
  %793 = vmatprep.subr.mxu0 0.0
  %794 = vmatpush1.xpose.msra.mxu0 %v199
  %795 = vmatprep.subr.mxu0 0.0
  %796 = vmatpush1.xpose.msra.mxu0 %v202
  %797 = vmatprep.subr.mxu0 0.0
  %798 = vmatpush1.xpose.msra.mxu0 %v205
  %799 = vmatprep.subr.mxu0 0.0
  %800 = vmatpush1.xpose.msra.mxu0 %v208
  %801 = vmatprep.subr.mxu0 0.0
  %802 = vmatpush1.xpose.msra.mxu0 %v211
  %803 = vmatprep.subr.mxu0 0.0
  %804 = vmatpush1.xpose.msra.mxu0 %v214
  %805 = vmatprep.subr.mxu0 0.0
  %806 = vmatpush1.xpose.msra.mxu0 %v217
  %807 = vmatprep.subr.mxu0 0.0
  %808 = vmatpush1.xpose.msra.mxu0 %v220
  %809 = vmatprep.subr.mxu0 0.0
  %810 = vmatpush1.xpose.msra.mxu0 %v223
  %811 = vmatprep.subr.mxu0 0.0
  %812 = vmatpush1.xpose.msra.mxu0 %v226
  %813 = vmatprep.subr.mxu0 0.0
  %814 = vmatpush1.xpose.msra.mxu0 %v229
  %815 = vmatprep.subr.mxu0 0.0
  %816 = vmatpush1.xpose.msra.mxu0 %v232
  %817 = vmatprep.subr.mxu0 0.0
  %818 = vmatpush1.xpose.msra.mxu0 %v235
  %819 = vmatprep.subr.mxu0 0.0
  %820 = vmatpush1.xpose.msra.mxu0 %v238
  %821 = vmatprep.subr.mxu0 0.0
  %822 = vmatpush1.xpose.msra.mxu0 %v241
  %823 = vmatprep.subr.mxu0 0.0
  %824 = vmatpush1.xpose.msra.mxu0 %v244
  %825 = vmatprep.subr.mxu0 0.0
  %826 = vmatpush1.xpose.msra.mxu0 %v247
  %827 = vmatprep.subr.mxu0 0.0
  %828 = vmatpush1.xpose.msra.mxu0 %v250
  %829 = vmatprep.subr.mxu0 0.0
  %830 = vmatpush1.xpose.msra.mxu0 %v253
  %831 = vmatprep.subr.mxu0 0.0
  %832 = vmatpush1.xpose.msra.mxu0 %v256
  %833 = vmatprep.subr.mxu0 0.0
  %834 = vmatpush1.xpose.msra.mxu0 %v259
  %835 = vmatprep.subr.mxu0 0.0
  %836 = vmatpush1.xpose.msra.mxu0 %v262
  %837 = vmatprep.subr.mxu0 0.0
  %838 = vmatpush1.xpose.msra.mxu0 %v265
  %839 = vmatprep.subr.mxu0 0.0
  %840 = vmatpush1.xpose.msra.mxu0 %v268
  %841 = vmatprep.subr.mxu0 0.0
  %842 = vmatpush1.xpose.msra.mxu0 %v271
  %843 = vmatprep.mubr.f32.mxu0 0.0
  %844 = vmatmul.mubr.f32.gmra.mrb[0].mxu0 %v768
  %v845 = vpop.f32.mrb[0].mxu0
  %v846 = vadd.f32 0.0, %v845
  %v847 = vpop.f32.mrb[0].mxu0
  %v848 = vadd.f32 0.0, %v847
  %849 = vmatprep.mubr.f32.mxu0 0.0
  %850 = vmatmul.mubr.f32.gmra.mrb[0].mxu0 %v771
  %v851 = vpop.f32.mrb[0].mxu0
  %v852 = vadd.f32 0.0, %v851
  %v853 = vpop.f32.mrb[0].mxu0
  %v854 = vadd.f32 0.0, %v853
  %855 = vmatprep.mubr.f32.mxu0 0.0
  %856 = vmatmul.mubr.f32.gmra.mrb[0].mxu0 %v774
  %v857 = vpop.f32.mrb[0].mxu0
  %v858 = vadd.f32 0.0, %v857
  %v859 = vpop.f32.mrb[0].mxu0
  %v860 = vadd.f32 0.0, %v859
  %861 = vmatprep.mubr.f32.mxu0 0.0
  %862 = vmatmul.mubr.f32.gmra.mrb[0].mxu0 %v777
  %v863 = vpop.f32.mrb[0].mxu0
  %v864 = vadd.f32 0.0, %v863
  %v865 = vpop.f32.mrb[0].mxu0
  %v866 = vadd.f32 0.0, %v865
  %867 = vdwg.mxu0
  %868 = vmatprep.subr.mxu0 0.0
  %869 = vmatpush1.xpose.msra.mxu0 %v274
  %870 = vmatprep.subr.mxu0 0.0
  %871 = vmatpush1.xpose.msra.mxu0 %v277
  %872 = vmatprep.subr.mxu0 0.0
  %873 = vmatpush1.xpose.msra.mxu0 %v280
  %874 = vmatprep.subr.mxu0 0.0
  %875 = vmatpush1.xpose.msra.mxu0 %v283
  %876 = vmatprep.subr.mxu0 0.0
  %877 = vmatpush1.xpose.msra.mxu0 %v286
  %878 = vmatprep.subr.mxu0 0.0
  %879 = vmatpush1.xpose.msra.mxu0 %v289
  %880 = vmatprep.subr.mxu0 0.0
  %881 = vmatpush1.xpose.msra.mxu0 %v292
  %882 = vmatprep.subr.mxu0 0.0
  %883 = vmatpush1.xpose.msra.mxu0 %v295
  %884 = vmatprep.subr.mxu0 0.0
  %885 = vmatpush1.xpose.msra.mxu0 %v298
  %886 = vmatprep.subr.mxu0 0.0
  %887 = vmatpush1.xpose.msra.mxu0 %v301
  %888 = vmatprep.subr.mxu0 0.0
  %889 = vmatpush1.xpose.msra.mxu0 %v304
  %890 = vmatprep.subr.mxu0 0.0
  %891 = vmatpush1.xpose.msra.mxu0 %v307
  %892 = vmatprep.subr.mxu0 0.0
  %893 = vmatpush1.xpose.msra.mxu0 %v310
  %894 = vmatprep.subr.mxu0 0.0
  %895 = vmatpush1.xpose.msra.mxu0 %v313
  %896 = vmatprep.subr.mxu0 0.0
  %897 = vmatpush1.xpose.msra.mxu0 %v316
  %898 = vmatprep.subr.mxu0 0.0
  %899 = vmatpush1.xpose.msra.mxu0 %v319
  %900 = vmatprep.subr.mxu0 0.0
  %901 = vmatpush1.xpose.msra.mxu0 %v322
  %902 = vmatprep.subr.mxu0 0.0
  %903 = vmatpush1.xpose.msra.mxu0 %v325
  %904 = vmatprep.subr.mxu0 0.0
  %905 = vmatpush1.xpose.msra.mxu0 %v328
  %906 = vmatprep.subr.mxu0 0.0
  %907 = vmatpush1.xpose.msra.mxu0 %v331
  %908 = vmatprep.subr.mxu0 0.0
  %909 = vmatpush1.xpose.msra.mxu0 %v334
  %910 = vmatprep.subr.mxu0 0.0
  %911 = vmatpush1.xpose.msra.mxu0 %v337
  %912 = vmatprep.subr.mxu0 0.0
  %913 = vmatpush1.xpose.msra.mxu0 %v340
  %914 = vmatprep.subr.mxu0 0.0
  %915 = vmatpush1.xpose.msra.mxu0 %v343
  %916 = vmatprep.subr.mxu0 0.0
  %917 = vmatpush1.xpose.msra.mxu0 %v346
  %918 = vmatprep.subr.mxu0 0.0
  %919 = vmatpush1.xpose.msra.mxu0 %v349
  %920 = vmatprep.subr.mxu0 0.0
  %921 = vmatpush1.xpose.msra.mxu0 %v352
  %922 = vmatprep.subr.mxu0 0.0
  %923 = vmatpush1.xpose.msra.mxu0 %v355
  %924 = vmatprep.subr.mxu0 0.0
  %925 = vmatpush1.xpose.msra.mxu0 %v358
  %926 = vmatprep.subr.mxu0 0.0
  %927 = vmatpush1.xpose.msra.mxu0 %v361
  %928 = vmatprep.subr.mxu0 0.0
  %929 = vmatpush1.xpose.msra.mxu0 %v364
  %930 = vmatprep.subr.mxu0 0.0
  %931 = vmatpush1.xpose.msra.mxu0 %v367
  %932 = vmatprep.mubr.f32.mxu0 0.0
  %933 = vmatmul.mubr.f32.gmra.mrb[0].mxu0 %v768
  %v934 = vpop.f32.mrb[0].mxu0
  %v935 = vadd.f32 0.0, %v934
  %v936 = vpop.f32.mrb[0].mxu0
  %v937 = vadd.f32 0.0, %v936
  %938 = vmatprep.mubr.f32.mxu0 0.0
  %939 = vmatmul.mubr.f32.gmra.mrb[0].mxu0 %v771
  %v940 = vpop.f32.mrb[0].mxu0
  %v941 = vadd.f32 0.0, %v940
  %v942 = vpop.f32.mrb[0].mxu0
  %v943 = vadd.f32 0.0, %v942
  %944 = vmatprep.mubr.f32.mxu0 0.0
  %945 = vmatmul.mubr.f32.gmra.mrb[0].mxu0 %v774
  %v946 = vpop.f32.mrb[0].mxu0
  %v947 = vadd.f32 0.0, %v946
  %v948 = vpop.f32.mrb[0].mxu0
  %v949 = vadd.f32 0.0, %v948
  %950 = vmatprep.mubr.f32.mxu0 0.0
  %951 = vmatmul.mubr.f32.gmra.mrb[0].mxu0 %v777
  %v952 = vpop.f32.mrb[0].mxu0
  %v953 = vadd.f32 0.0, %v952
  %v954 = vpop.f32.mrb[0].mxu0
  %v955 = vadd.f32 0.0, %v954
  %956 = vdwg.mxu0
  %vm957 = vcmask 523264
  %v959 = vsel %vm957, %v755, 0
  %v962 = vsel %vm957, %v756, 0
  %v965 = vsel %vm957, %v757, 0
  %v968 = vsel %vm957, %v758, 0
  %970 = vmatprep.subr.mxu0 %v724
  %971 = vmatpush1.msra.mxu0 %v723
  %972 = vmatprep.subr.mxu0 %v728
  %973 = vmatpush1.msra.mxu0 %v727
  %974 = vmatprep.subr.mxu0 %v732
  %975 = vmatpush1.msra.mxu0 %v731
  %976 = vmatprep.subr.mxu0 %v736
  %977 = vmatpush1.msra.mxu0 %v735
  %978 = vmatprep.subr.mxu0 %v740
  %979 = vmatpush1.msra.mxu0 %v739
  %980 = vmatprep.subr.mxu0 %v744
  %981 = vmatpush1.msra.mxu0 %v743
  %982 = vmatprep.subr.mxu0 %v748
  %983 = vmatpush1.msra.mxu0 %v747
  %984 = vmatprep.subr.mxu0 %v752
  %985 = vmatpush1.msra.mxu0 %v751
  %986 = vmatprep.subr.mxu0 0.0
  %987 = vmatpush1.msra.mxu0 0.0
  %988 = vmatprep.subr.mxu0 0.0
  %989 = vmatpush1.msra.mxu0 0.0
  %990 = vmatprep.subr.mxu0 0.0
  %991 = vmatpush1.msra.mxu0 0.0
  %992 = vmatprep.subr.mxu0 0.0
  %993 = vmatpush1.msra.mxu0 0.0
  %994 = vmatprep.subr.mxu0 0.0
  %995 = vmatpush1.msra.mxu0 0.0
  %996 = vmatprep.subr.mxu0 0.0
  %997 = vmatpush1.msra.mxu0 0.0
  %998 = vmatprep.subr.mxu0 0.0
  %999 = vmatpush1.msra.mxu0 0.0
  %1000 = vmatprep.subr.mxu0 0.0
  %1001 = vmatpush1.msra.mxu0 0.0
  %1002 = vmatprep.subr.mxu0 0.0
  %1003 = vmatpush1.msra.mxu0 0.0
  %1004 = vmatprep.subr.mxu0 0.0
  %1005 = vmatpush1.msra.mxu0 0.0
  %1006 = vmatprep.subr.mxu0 0.0
  %1007 = vmatpush1.msra.mxu0 0.0
  %1008 = vmatprep.subr.mxu0 0.0
  %1009 = vmatpush1.msra.mxu0 0.0
  %1010 = vmatprep.subr.mxu0 0.0
  %1011 = vmatpush1.msra.mxu0 0.0
  %1012 = vmatprep.subr.mxu0 0.0
  %1013 = vmatpush1.msra.mxu0 0.0
  %1014 = vmatprep.subr.mxu0 0.0
  %1015 = vmatpush1.msra.mxu0 0.0
  %1016 = vmatprep.subr.mxu0 0.0
  %1017 = vmatpush1.msra.mxu0 0.0
  %1018 = vmatprep.subr.mxu0 0.0
  %1019 = vmatpush1.msra.mxu0 0.0
  %1020 = vmatprep.subr.mxu0 0.0
  %1021 = vmatpush1.msra.mxu0 0.0
  %1022 = vmatprep.subr.mxu0 0.0
  %1023 = vmatpush1.msra.mxu0 0.0
  %1024 = vmatprep.subr.mxu0 0.0
  %1025 = vmatpush1.msra.mxu0 0.0
  %1026 = vmatprep.subr.mxu0 0.0
  %1027 = vmatpush1.msra.mxu0 0.0
  %1028 = vmatprep.subr.mxu0 0.0
  %1029 = vmatpush1.msra.mxu0 0.0
  %1030 = vmatprep.subr.mxu0 0.0
  %1031 = vmatpush1.msra.mxu0 0.0
  %1032 = vmatprep.subr.mxu0 0.0
  %1033 = vmatpush1.msra.mxu0 0.0
  %1034 = vmatprep.mubr.f32.mxu0 0.0
  %1035 = vmatmul.mubr.f32.gmra.mrb[0].mxu0 %v959
  %v1036 = vpop.f32.mrb[0].mxu0
  %v1037 = vadd.f32 %v846, %v1036
  %v1038 = vpop.f32.mrb[0].mxu0
  %v1039 = vadd.f32 %v848, %v1038
  %1040 = vmatprep.mubr.f32.mxu0 0.0
  %1041 = vmatmul.mubr.f32.gmra.mrb[0].mxu0 %v962
  %v1042 = vpop.f32.mrb[0].mxu0
  %v1043 = vadd.f32 %v852, %v1042
  %v1044 = vpop.f32.mrb[0].mxu0
  %v1045 = vadd.f32 %v854, %v1044
  %1046 = vmatprep.mubr.f32.mxu0 0.0
  %1047 = vmatmul.mubr.f32.gmra.mrb[0].mxu0 %v965
  %v1048 = vpop.f32.mrb[0].mxu0
  %v1049 = vadd.f32 %v858, %v1048
  %v1050 = vpop.f32.mrb[0].mxu0
  %v1051 = vadd.f32 %v860, %v1050
  %1052 = vmatprep.mubr.f32.mxu0 0.0
  %1053 = vmatmul.mubr.f32.gmra.mrb[0].mxu0 %v968
  %v1054 = vpop.f32.mrb[0].mxu0
  %v1055 = vadd.f32 %v864, %v1054
  %v1056 = vpop.f32.mrb[0].mxu0
  %v1057 = vadd.f32 %v866, %v1056
  %1058 = vdwg.mxu0
  %1059 = vmatprep.subr.mxu0 %v726
  %1060 = vmatpush1.msra.mxu0 %v725
  %1061 = vmatprep.subr.mxu0 %v730
  %1062 = vmatpush1.msra.mxu0 %v729
  %1063 = vmatprep.subr.mxu0 %v734
  %1064 = vmatpush1.msra.mxu0 %v733
  %1065 = vmatprep.subr.mxu0 %v738
  %1066 = vmatpush1.msra.mxu0 %v737
  %1067 = vmatprep.subr.mxu0 %v742
  %1068 = vmatpush1.msra.mxu0 %v741
  %1069 = vmatprep.subr.mxu0 %v746
  %1070 = vmatpush1.msra.mxu0 %v745
  %1071 = vmatprep.subr.mxu0 %v750
  %1072 = vmatpush1.msra.mxu0 %v749
  %1073 = vmatprep.subr.mxu0 %v754
  %1074 = vmatpush1.msra.mxu0 %v753
  %1075 = vmatprep.subr.mxu0 0.0
  %1076 = vmatpush1.msra.mxu0 0.0
  %1077 = vmatprep.subr.mxu0 0.0
  %1078 = vmatpush1.msra.mxu0 0.0
  %1079 = vmatprep.subr.mxu0 0.0
  %1080 = vmatpush1.msra.mxu0 0.0
  %1081 = vmatprep.subr.mxu0 0.0
  %1082 = vmatpush1.msra.mxu0 0.0
  %1083 = vmatprep.subr.mxu0 0.0
  %1084 = vmatpush1.msra.mxu0 0.0
  %1085 = vmatprep.subr.mxu0 0.0
  %1086 = vmatpush1.msra.mxu0 0.0
  %1087 = vmatprep.subr.mxu0 0.0
  %1088 = vmatpush1.msra.mxu0 0.0
  %1089 = vmatprep.subr.mxu0 0.0
  %1090 = vmatpush1.msra.mxu0 0.0
  %1091 = vmatprep.subr.mxu0 0.0
  %1092 = vmatpush1.msra.mxu0 0.0
  %1093 = vmatprep.subr.mxu0 0.0
  %1094 = vmatpush1.msra.mxu0 0.0
  %1095 = vmatprep.subr.mxu0 0.0
  %1096 = vmatpush1.msra.mxu0 0.0
  %1097 = vmatprep.subr.mxu0 0.0
  %1098 = vmatpush1.msra.mxu0 0.0
  %1099 = vmatprep.subr.mxu0 0.0
  %1100 = vmatpush1.msra.mxu0 0.0
  %1101 = vmatprep.subr.mxu0 0.0
  %1102 = vmatpush1.msra.mxu0 0.0
  %1103 = vmatprep.subr.mxu0 0.0
  %1104 = vmatpush1.msra.mxu0 0.0
  %1105 = vmatprep.subr.mxu0 0.0
  %1106 = vmatpush1.msra.mxu0 0.0
  %1107 = vmatprep.subr.mxu0 0.0
  %1108 = vmatpush1.msra.mxu0 0.0
  %1109 = vmatprep.subr.mxu0 0.0
  %1110 = vmatpush1.msra.mxu0 0.0
  %1111 = vmatprep.subr.mxu0 0.0
  %1112 = vmatpush1.msra.mxu0 0.0
  %1113 = vmatprep.subr.mxu0 0.0
  %1114 = vmatpush1.msra.mxu0 0.0
  %1115 = vmatprep.subr.mxu0 0.0
  %1116 = vmatpush1.msra.mxu0 0.0
  %1117 = vmatprep.subr.mxu0 0.0
  %1118 = vmatpush1.msra.mxu0 0.0
  %1119 = vmatprep.subr.mxu0 0.0
  %1120 = vmatpush1.msra.mxu0 0.0
  %1121 = vmatprep.subr.mxu0 0.0
  %1122 = vmatpush1.msra.mxu0 0.0
  %1123 = vmatprep.mubr.f32.mxu0 0.0
  %1124 = vmatmul.mubr.f32.gmra.mrb[0].mxu0 %v959
  %v1125 = vpop.f32.mrb[0].mxu0
  %v1126 = vadd.f32 %v935, %v1125
  %v1127 = vpop.f32.mrb[0].mxu0
  %v1128 = vadd.f32 %v937, %v1127
  %1129 = vmatprep.mubr.f32.mxu0 0.0
  %1130 = vmatmul.mubr.f32.gmra.mrb[0].mxu0 %v962
  %v1131 = vpop.f32.mrb[0].mxu0
  %v1132 = vadd.f32 %v941, %v1131
  %v1133 = vpop.f32.mrb[0].mxu0
  %v1134 = vadd.f32 %v943, %v1133
  %1135 = vmatprep.mubr.f32.mxu0 0.0
  %1136 = vmatmul.mubr.f32.gmra.mrb[0].mxu0 %v965
  %v1137 = vpop.f32.mrb[0].mxu0
  %v1138 = vadd.f32 %v947, %v1137
  %v1139 = vpop.f32.mrb[0].mxu0
  %v1140 = vadd.f32 %v949, %v1139
  %1141 = vmatprep.mubr.f32.mxu0 0.0
  %1142 = vmatmul.mubr.f32.gmra.mrb[0].mxu0 %v968
  %v1143 = vpop.f32.mrb[0].mxu0
  %v1144 = vadd.f32 %v953, %v1143
  %v1145 = vpop.f32.mrb[0].mxu0
  %v1146 = vadd.f32 %v955, %v1145
  %1147 = vdwg.mxu0
  %1149 = vset.pattern.permute.xlu0 0
  %1150 = vperm.xlu0 %1149, %v763
  %v1151 = vpop.permute.xlu0 %1150
  %1154 = vset.pattern.permute.xlu0 0
  %1155 = vperm.xlu0 %1154, %v764
  %v1156 = vpop.permute.xlu0 %1155
  %1159 = vset.pattern.permute.xlu0 0
  %1160 = vperm.xlu0 %1159, %v765
  %v1161 = vpop.permute.xlu0 %1160
  %1164 = vset.pattern.permute.xlu0 0
  %1165 = vperm.xlu0 %1164, %v766
  %v1166 = vpop.permute.xlu0 %1165
  %v1168 = vadd.f32 %v1037, %v1151
  %v1169 = vadd.f32 %v1039, %v1151
  %v1170 = vadd.f32 %v1126, %v1151
  %v1171 = vadd.f32 %v1128, %v1151
  %v1172 = vadd.f32 %v1043, %v1156
  %v1173 = vadd.f32 %v1045, %v1156
  %v1174 = vadd.f32 %v1132, %v1156
  %v1175 = vadd.f32 %v1134, %v1156
  %v1176 = vadd.f32 %v1049, %v1161
  %v1177 = vadd.f32 %v1051, %v1161
  %v1178 = vadd.f32 %v1138, %v1161
  %v1179 = vadd.f32 %v1140, %v1161
  %v1180 = vadd.f32 %v1055, %v1166
  %v1181 = vadd.f32 %v1057, %v1166
  %v1182 = vadd.f32 %v1144, %v1166
  %v1183 = vadd.f32 %v1146, %v1166
  %v1184 = vmul.f32 %v1168, 0.5
  %v1185 = vmul.f32 %v1169, 0.5
  %v1186 = vmul.f32 %v1170, 0.5
  %v1187 = vmul.f32 %v1171, 0.5
  %v1188 = vmul.f32 %v1172, 0.5
  %v1189 = vmul.f32 %v1173, 0.5
  %v1190 = vmul.f32 %v1174, 0.5
  %v1191 = vmul.f32 %v1175, 0.5
  %v1192 = vmul.f32 %v1176, 0.5
  %v1193 = vmul.f32 %v1177, 0.5
  %v1194 = vmul.f32 %v1178, 0.5
  %v1195 = vmul.f32 %v1179, 0.5
  %v1196 = vmul.f32 %v1180, 0.5
  %v1197 = vmul.f32 %v1181, 0.5
  %v1198 = vmul.f32 %v1182, 0.5
  %v1199 = vmul.f32 %v1183, 0.5
  %v1200 = vmul.f32 %v1168, 0.70710677
  %v1201 = vmul.f32 %v1169, 0.70710677
  %v1202 = vmul.f32 %v1170, 0.70710677
  %v1203 = vmul.f32 %v1171, 0.70710677
  %v1204 = vmul.f32 %v1172, 0.70710677
  %v1205 = vmul.f32 %v1173, 0.70710677
  %v1206 = vmul.f32 %v1174, 0.70710677
  %v1207 = vmul.f32 %v1175, 0.70710677
  %v1208 = vmul.f32 %v1176, 0.70710677
  %v1209 = vmul.f32 %v1177, 0.70710677
  %v1210 = vmul.f32 %v1178, 0.70710677
  %v1211 = vmul.f32 %v1179, 0.70710677
  %v1212 = vmul.f32 %v1180, 0.70710677
  %v1213 = vmul.f32 %v1181, 0.70710677
  %v1214 = vmul.f32 %v1182, 0.70710677
  %v1215 = vmul.f32 %v1183, 0.70710677
  %v1216 = verf.f32.pop %v1200
  %v1217 = verf.f32.pop %v1201
  %v1218 = verf.f32.pop %v1202
  %v1219 = verf.f32.pop %v1203
  %v1220 = verf.f32.pop %v1204
  %v1221 = verf.f32.pop %v1205
  %v1222 = verf.f32.pop %v1206
  %v1223 = verf.f32.pop %v1207
  %v1224 = verf.f32.pop %v1208
  %v1225 = verf.f32.pop %v1209
  %v1226 = verf.f32.pop %v1210
  %v1227 = verf.f32.pop %v1211
  %v1228 = verf.f32.pop %v1212
  %v1229 = verf.f32.pop %v1213
  %v1230 = verf.f32.pop %v1214
  %v1231 = verf.f32.pop %v1215
  %v1232 = vadd.f32 %v1216, 1.0
  %v1233 = vadd.f32 %v1217, 1.0
  %v1234 = vadd.f32 %v1218, 1.0
  %v1235 = vadd.f32 %v1219, 1.0
  %v1236 = vadd.f32 %v1220, 1.0
  %v1237 = vadd.f32 %v1221, 1.0
  %v1238 = vadd.f32 %v1222, 1.0
  %v1239 = vadd.f32 %v1223, 1.0
  %v1240 = vadd.f32 %v1224, 1.0
  %v1241 = vadd.f32 %v1225, 1.0
  %v1242 = vadd.f32 %v1226, 1.0
  %v1243 = vadd.f32 %v1227, 1.0
  %v1244 = vadd.f32 %v1228, 1.0
  %v1245 = vadd.f32 %v1229, 1.0
  %v1246 = vadd.f32 %v1230, 1.0
  %v1247 = vadd.f32 %v1231, 1.0
  %v1248 = vmul.f32 %v1184, %v1232
  %v1249 = vmul.f32 %v1185, %v1233
  %v1250 = vmul.f32 %v1186, %v1234
  %v1251 = vmul.f32 %v1187, %v1235
  %v1252 = vmul.f32 %v1188, %v1236
  %v1253 = vmul.f32 %v1189, %v1237
  %v1254 = vmul.f32 %v1190, %v1238
  %v1255 = vmul.f32 %v1191, %v1239
  %v1256 = vmul.f32 %v1192, %v1240
  %v1257 = vmul.f32 %v1193, %v1241
  %v1258 = vmul.f32 %v1194, %v1242
  %v1259 = vmul.f32 %v1195, %v1243
  %v1260 = vmul.f32 %v1196, %v1244
  %v1261 = vmul.f32 %v1197, %v1245
  %v1262 = vmul.f32 %v1198, %v1246
  %v1263 = vmul.f32 %v1199, %v1247
  %v1264 = vld [vmem:[%s6] sm:$0xff]
  %v1265 = vld [vmem:[%s7] sm:$0xff]
  %v1266 = vld [vmem:[%s8] sm:$0xff]
  %v1268 = vsel %vm152, %v1265, 0
  %1270 = vmatprep.subr.mxu0 0.0
  %1271 = vmatpush1.xpose.msra.mxu0 %v178
  %1272 = vmatprep.subr.mxu0 0.0
  %1273 = vmatpush1.xpose.msra.mxu0 %v181
  %1274 = vmatprep.subr.mxu0 0.0
  %1275 = vmatpush1.xpose.msra.mxu0 %v184
  %1276 = vmatprep.subr.mxu0 0.0
  %1277 = vmatpush1.xpose.msra.mxu0 %v187
  %1278 = vmatprep.subr.mxu0 0.0
  %1279 = vmatpush1.xpose.msra.mxu0 %v190
  %1280 = vmatprep.subr.mxu0 0.0
  %1281 = vmatpush1.xpose.msra.mxu0 %v193
  %1282 = vmatprep.subr.mxu0 0.0
  %1283 = vmatpush1.xpose.msra.mxu0 %v196
  %1284 = vmatprep.subr.mxu0 0.0
  %1285 = vmatpush1.xpose.msra.mxu0 %v199
  %1286 = vmatprep.subr.mxu0 0.0
  %1287 = vmatpush1.xpose.msra.mxu0 %v202
  %1288 = vmatprep.subr.mxu0 0.0
  %1289 = vmatpush1.xpose.msra.mxu0 %v205
  %1290 = vmatprep.subr.mxu0 0.0
  %1291 = vmatpush1.xpose.msra.mxu0 %v208
  %1292 = vmatprep.subr.mxu0 0.0
  %1293 = vmatpush1.xpose.msra.mxu0 %v211
  %1294 = vmatprep.subr.mxu0 0.0
  %1295 = vmatpush1.xpose.msra.mxu0 %v214
  %1296 = vmatprep.subr.mxu0 0.0
  %1297 = vmatpush1.xpose.msra.mxu0 %v217
  %1298 = vmatprep.subr.mxu0 0.0
  %1299 = vmatpush1.xpose.msra.mxu0 %v220
  %1300 = vmatprep.subr.mxu0 0.0
  %1301 = vmatpush1.xpose.msra.mxu0 %v223
  %1302 = vmatprep.subr.mxu0 0.0
  %1303 = vmatpush1.xpose.msra.mxu0 %v226
  %1304 = vmatprep.subr.mxu0 0.0
  %1305 = vmatpush1.xpose.msra.mxu0 %v229
  %1306 = vmatprep.subr.mxu0 0.0
  %1307 = vmatpush1.xpose.msra.mxu0 %v232
  %1308 = vmatprep.subr.mxu0 0.0
  %1309 = vmatpush1.xpose.msra.mxu0 %v235
  %1310 = vmatprep.subr.mxu0 0.0
  %1311 = vmatpush1.xpose.msra.mxu0 %v238
  %1312 = vmatprep.subr.mxu0 0.0
  %1313 = vmatpush1.xpose.msra.mxu0 %v241
  %1314 = vmatprep.subr.mxu0 0.0
  %1315 = vmatpush1.xpose.msra.mxu0 %v244
  %1316 = vmatprep.subr.mxu0 0.0
  %1317 = vmatpush1.xpose.msra.mxu0 %v247
  %1318 = vmatprep.subr.mxu0 0.0
  %1319 = vmatpush1.xpose.msra.mxu0 %v250
  %1320 = vmatprep.subr.mxu0 0.0
  %1321 = vmatpush1.xpose.msra.mxu0 %v253
  %1322 = vmatprep.subr.mxu0 0.0
  %1323 = vmatpush1.xpose.msra.mxu0 %v256
  %1324 = vmatprep.subr.mxu0 0.0
  %1325 = vmatpush1.xpose.msra.mxu0 %v259
  %1326 = vmatprep.subr.mxu0 0.0
  %1327 = vmatpush1.xpose.msra.mxu0 %v262
  %1328 = vmatprep.subr.mxu0 0.0
  %1329 = vmatpush1.xpose.msra.mxu0 %v265
  %1330 = vmatprep.subr.mxu0 0.0
  %1331 = vmatpush1.xpose.msra.mxu0 %v268
  %1332 = vmatprep.subr.mxu0 0.0
  %1333 = vmatpush1.xpose.msra.mxu0 %v271
  %1334 = vmatprep.mubr.f32.mxu0 0.0
  %1335 = vmatmul.mubr.f32.gmra.mrb[0].mxu0 %v1268
  %v1336 = vpop.f32.mrb[0].mxu0
  %v1337 = vadd.f32 0.0, %v1336
  %v1338 = vpop.f32.mrb[0].mxu0
  %v1339 = vadd.f32 0.0, %v1338
  %1340 = vdwg.mxu0
  %1341 = vmatprep.subr.mxu0 0.0
  %1342 = vmatpush1.xpose.msra.mxu0 %v274
  %1343 = vmatprep.subr.mxu0 0.0
  %1344 = vmatpush1.xpose.msra.mxu0 %v277
  %1345 = vmatprep.subr.mxu0 0.0
  %1346 = vmatpush1.xpose.msra.mxu0 %v280
  %1347 = vmatprep.subr.mxu0 0.0
  %1348 = vmatpush1.xpose.msra.mxu0 %v283
  %1349 = vmatprep.subr.mxu0 0.0
  %1350 = vmatpush1.xpose.msra.mxu0 %v286
  %1351 = vmatprep.subr.mxu0 0.0
  %1352 = vmatpush1.xpose.msra.mxu0 %v289
  %1353 = vmatprep.subr.mxu0 0.0
  %1354 = vmatpush1.xpose.msra.mxu0 %v292
  %1355 = vmatprep.subr.mxu0 0.0
  %1356 = vmatpush1.xpose.msra.mxu0 %v295
  %1357 = vmatprep.subr.mxu0 0.0
  %1358 = vmatpush1.xpose.msra.mxu0 %v298
  %1359 = vmatprep.subr.mxu0 0.0
  %1360 = vmatpush1.xpose.msra.mxu0 %v301
  %1361 = vmatprep.subr.mxu0 0.0
  %1362 = vmatpush1.xpose.msra.mxu0 %v304
  %1363 = vmatprep.subr.mxu0 0.0
  %1364 = vmatpush1.xpose.msra.mxu0 %v307
  %1365 = vmatprep.subr.mxu0 0.0
  %1366 = vmatpush1.xpose.msra.mxu0 %v310
  %1367 = vmatprep.subr.mxu0 0.0
  %1368 = vmatpush1.xpose.msra.mxu0 %v313
  %1369 = vmatprep.subr.mxu0 0.0
  %1370 = vmatpush1.xpose.msra.mxu0 %v316
  %1371 = vmatprep.subr.mxu0 0.0
  %1372 = vmatpush1.xpose.msra.mxu0 %v319
  %1373 = vmatprep.subr.mxu0 0.0
  %1374 = vmatpush1.xpose.msra.mxu0 %v322
  %1375 = vmatprep.subr.mxu0 0.0
  %1376 = vmatpush1.xpose.msra.mxu0 %v325
  %1377 = vmatprep.subr.mxu0 0.0
  %1378 = vmatpush1.xpose.msra.mxu0 %v328
  %1379 = vmatprep.subr.mxu0 0.0
  %1380 = vmatpush1.xpose.msra.mxu0 %v331
  %1381 = vmatprep.subr.mxu0 0.0
  %1382 = vmatpush1.xpose.msra.mxu0 %v334
  %1383 = vmatprep.subr.mxu0 0.0
  %1384 = vmatpush1.xpose.msra.mxu0 %v337
  %1385 = vmatprep.subr.mxu0 0.0
  %1386 = vmatpush1.xpose.msra.mxu0 %v340
  %1387 = vmatprep.subr.mxu0 0.0
  %1388 = vmatpush1.xpose.msra.mxu0 %v343
  %1389 = vmatprep.subr.mxu0 0.0
  %1390 = vmatpush1.xpose.msra.mxu0 %v346
  %1391 = vmatprep.subr.mxu0 0.0
  %1392 = vmatpush1.xpose.msra.mxu0 %v349
  %1393 = vmatprep.subr.mxu0 0.0
  %1394 = vmatpush1.xpose.msra.mxu0 %v352
  %1395 = vmatprep.subr.mxu0 0.0
  %1396 = vmatpush1.xpose.msra.mxu0 %v355
  %1397 = vmatprep.subr.mxu0 0.0
  %1398 = vmatpush1.xpose.msra.mxu0 %v358
  %1399 = vmatprep.subr.mxu0 0.0
  %1400 = vmatpush1.xpose.msra.mxu0 %v361
  %1401 = vmatprep.subr.mxu0 0.0
  %1402 = vmatpush1.xpose.msra.mxu0 %v364
  %1403 = vmatprep.subr.mxu0 0.0
  %1404 = vmatpush1.xpose.msra.mxu0 %v367
  %1405 = vmatprep.mubr.f32.mxu0 0.0
  %1406 = vmatmul.mubr.f32.gmra.mrb[0].mxu0 %v1268
  %v1407 = vpop.f32.mrb[0].mxu0
  %v1408 = vadd.f32 0.0, %v1407
  %v1409 = vpop.f32.mrb[0].mxu0
  %v1410 = vadd.f32 0.0, %v1409
  %1411 = vdwg.mxu0
  %vm1412 = vcmask 261120
  %v1414 = vsel %vm1412, %v1264, 0
  %1416 = vmatprep.subr.mxu0 %v1249
  %1417 = vmatpush1.msra.mxu0 %v1248
  %1418 = vmatprep.subr.mxu0 %v1253
  %1419 = vmatpush1.msra.mxu0 %v1252
  %1420 = vmatprep.subr.mxu0 %v1257
  %1421 = vmatpush1.msra.mxu0 %v1256
  %1422 = vmatprep.subr.mxu0 %v1261
  %1423 = vmatpush1.msra.mxu0 %v1260
  %1424 = vmatprep.subr.mxu0 0.0
  %1425 = vmatpush1.msra.mxu0 0.0
  %1426 = vmatprep.subr.mxu0 0.0
  %1427 = vmatpush1.msra.mxu0 0.0
  %1428 = vmatprep.subr.mxu0 0.0
  %1429 = vmatpush1.msra.mxu0 0.0
  %1430 = vmatprep.subr.mxu0 0.0
  %1431 = vmatpush1.msra.mxu0 0.0
  %1432 = vmatprep.subr.mxu0 0.0
  %1433 = vmatpush1.msra.mxu0 0.0
  %1434 = vmatprep.subr.mxu0 0.0
  %1435 = vmatpush1.msra.mxu0 0.0
  %1436 = vmatprep.subr.mxu0 0.0
  %1437 = vmatpush1.msra.mxu0 0.0
  %1438 = vmatprep.subr.mxu0 0.0
  %1439 = vmatpush1.msra.mxu0 0.0
  %1440 = vmatprep.subr.mxu0 0.0
  %1441 = vmatpush1.msra.mxu0 0.0
  %1442 = vmatprep.subr.mxu0 0.0
  %1443 = vmatpush1.msra.mxu0 0.0
  %1444 = vmatprep.subr.mxu0 0.0
  %1445 = vmatpush1.msra.mxu0 0.0
  %1446 = vmatprep.subr.mxu0 0.0
  %1447 = vmatpush1.msra.mxu0 0.0
  %1448 = vmatprep.subr.mxu0 0.0
  %1449 = vmatpush1.msra.mxu0 0.0
  %1450 = vmatprep.subr.mxu0 0.0
  %1451 = vmatpush1.msra.mxu0 0.0
  %1452 = vmatprep.subr.mxu0 0.0
  %1453 = vmatpush1.msra.mxu0 0.0
  %1454 = vmatprep.subr.mxu0 0.0
  %1455 = vmatpush1.msra.mxu0 0.0
  %1456 = vmatprep.subr.mxu0 0.0
  %1457 = vmatpush1.msra.mxu0 0.0
  %1458 = vmatprep.subr.mxu0 0.0
  %1459 = vmatpush1.msra.mxu0 0.0
  %1460 = vmatprep.subr.mxu0 0.0
  %1461 = vmatpush1.msra.mxu0 0.0
  %1462 = vmatprep.subr.mxu0 0.0
  %1463 = vmatpush1.msra.mxu0 0.0
  %1464 = vmatprep.subr.mxu0 0.0
  %1465 = vmatpush1.msra.mxu0 0.0
  %1466 = vmatprep.subr.mxu0 0.0
  %1467 = vmatpush1.msra.mxu0 0.0
  %1468 = vmatprep.subr.mxu0 0.0
  %1469 = vmatpush1.msra.mxu0 0.0
  %1470 = vmatprep.subr.mxu0 0.0
  %1471 = vmatpush1.msra.mxu0 0.0
  %1472 = vmatprep.subr.mxu0 0.0
  %1473 = vmatpush1.msra.mxu0 0.0
  %1474 = vmatprep.subr.mxu0 0.0
  %1475 = vmatpush1.msra.mxu0 0.0
  %1476 = vmatprep.subr.mxu0 0.0
  %1477 = vmatpush1.msra.mxu0 0.0
  %1478 = vmatprep.subr.mxu0 0.0
  %1479 = vmatpush1.msra.mxu0 0.0
  %1480 = vmatprep.mubr.f32.mxu0 0.0
  %1481 = vmatmul.mubr.f32.gmra.mrb[0].mxu0 %v1414
  %v1482 = vpop.f32.mrb[0].mxu0
  %v1483 = vadd.f32 %v1337, %v1482
  %v1484 = vpop.f32.mrb[0].mxu0
  %v1485 = vadd.f32 %v1339, %v1484
  %1486 = vdwg.mxu0
  %1487 = vmatprep.subr.mxu0 %v1251
  %1488 = vmatpush1.msra.mxu0 %v1250
  %1489 = vmatprep.subr.mxu0 %v1255
  %1490 = vmatpush1.msra.mxu0 %v1254
  %1491 = vmatprep.subr.mxu0 %v1259
  %1492 = vmatpush1.msra.mxu0 %v1258
  %1493 = vmatprep.subr.mxu0 %v1263
  %1494 = vmatpush1.msra.mxu0 %v1262
  %1495 = vmatprep.subr.mxu0 0.0
  %1496 = vmatpush1.msra.mxu0 0.0
  %1497 = vmatprep.subr.mxu0 0.0
  %1498 = vmatpush1.msra.mxu0 0.0
  %1499 = vmatprep.subr.mxu0 0.0
  %1500 = vmatpush1.msra.mxu0 0.0
  %1501 = vmatprep.subr.mxu0 0.0
  %1502 = vmatpush1.msra.mxu0 0.0
  %1503 = vmatprep.subr.mxu0 0.0
  %1504 = vmatpush1.msra.mxu0 0.0
  %1505 = vmatprep.subr.mxu0 0.0
  %1506 = vmatpush1.msra.mxu0 0.0
  %1507 = vmatprep.subr.mxu0 0.0
  %1508 = vmatpush1.msra.mxu0 0.0
  %1509 = vmatprep.subr.mxu0 0.0
  %1510 = vmatpush1.msra.mxu0 0.0
  %1511 = vmatprep.subr.mxu0 0.0
  %1512 = vmatpush1.msra.mxu0 0.0
  %1513 = vmatprep.subr.mxu0 0.0
  %1514 = vmatpush1.msra.mxu0 0.0
  %1515 = vmatprep.subr.mxu0 0.0
  %1516 = vmatpush1.msra.mxu0 0.0
  %1517 = vmatprep.subr.mxu0 0.0
  %1518 = vmatpush1.msra.mxu0 0.0
  %1519 = vmatprep.subr.mxu0 0.0
  %1520 = vmatpush1.msra.mxu0 0.0
  %1521 = vmatprep.subr.mxu0 0.0
  %1522 = vmatpush1.msra.mxu0 0.0
  %1523 = vmatprep.subr.mxu0 0.0
  %1524 = vmatpush1.msra.mxu0 0.0
  %1525 = vmatprep.subr.mxu0 0.0
  %1526 = vmatpush1.msra.mxu0 0.0
  %1527 = vmatprep.subr.mxu0 0.0
  %1528 = vmatpush1.msra.mxu0 0.0
  %1529 = vmatprep.subr.mxu0 0.0
  %1530 = vmatpush1.msra.mxu0 0.0
  %1531 = vmatprep.subr.mxu0 0.0
  %1532 = vmatpush1.msra.mxu0 0.0
  %1533 = vmatprep.subr.mxu0 0.0
  %1534 = vmatpush1.msra.mxu0 0.0
  %1535 = vmatprep.subr.mxu0 0.0
  %1536 = vmatpush1.msra.mxu0 0.0
  %1537 = vmatprep.subr.mxu0 0.0
  %1538 = vmatpush1.msra.mxu0 0.0
  %1539 = vmatprep.subr.mxu0 0.0
  %1540 = vmatpush1.msra.mxu0 0.0
  %1541 = vmatprep.subr.mxu0 0.0
  %1542 = vmatpush1.msra.mxu0 0.0
  %1543 = vmatprep.subr.mxu0 0.0
  %1544 = vmatpush1.msra.mxu0 0.0
  %1545 = vmatprep.subr.mxu0 0.0
  %1546 = vmatpush1.msra.mxu0 0.0
  %1547 = vmatprep.subr.mxu0 0.0
  %1548 = vmatpush1.msra.mxu0 0.0
  %1549 = vmatprep.subr.mxu0 0.0
  %1550 = vmatpush1.msra.mxu0 0.0
  %1551 = vmatprep.mubr.f32.mxu0 0.0
  %1552 = vmatmul.mubr.f32.gmra.mrb[0].mxu0 %v1414
  %v1553 = vpop.f32.mrb[0].mxu0
  %v1554 = vadd.f32 %v1408, %v1553
  %v1555 = vpop.f32.mrb[0].mxu0
  %v1556 = vadd.f32 %v1410, %v1555
  %1557 = vdwg.mxu0
  %1559 = vset.pattern.permute.xlu0 0
  %1560 = vperm.xlu0 %1559, %v1266
  %v1561 = vpop.permute.xlu0 %1560
  %v1563 = vadd.f32 %v1483, %v1561
  %v1564 = vadd.f32 %v1485, %v1561
  %v1565 = vadd.f32 %v1554, %v1561
  %v1566 = vadd.f32 %v1556, %v1561
  %1567 = vxpose.xlu0.b32.start [1/16] %v1563, 128
  %1568 = vxpose.xlu0.b32.cont [2/16] 0.0, 128
  %1569 = vxpose.xlu0.b32.cont [3/16] 0.0, 128
  %1570 = vxpose.xlu0.b32.cont [4/16] 0.0, 128
  %1571 = vxpose.xlu0.b32.cont [5/16] 0.0, 128
  %1572 = vxpose.xlu0.b32.cont [6/16] 0.0, 128
  %1573 = vxpose.xlu0.b32.cont [7/16] 0.0, 128
  %1574 = vxpose.xlu0.b32.cont [8/16] 0.0, 128
  %1575 = vxpose.xlu0.b32.cont [9/16] 0.0, 128
  %1576 = vxpose.xlu0.b32.cont [10/16] 0.0, 128
  %1577 = vxpose.xlu0.b32.cont [11/16] 0.0, 128
  %1578 = vxpose.xlu0.b32.cont [12/16] 0.0, 128
  %1579 = vxpose.xlu0.b32.cont [13/16] 0.0, 128
  %1580 = vxpose.xlu0.b32.cont [14/16] 0.0, 128
  %1581 = vxpose.xlu0.b32.cont [15/16] 0.0, 128
  %1582 = vxpose.xlu0.b32.end [16/16] 0.0, 128
  %v1583 = vpop.trf.xlu0
  %v1584 = vpop.trf.xlu0
  %v1585 = vpop.trf.xlu0
  %v1586 = vpop.trf.xlu0
  %v1587 = vpop.trf.xlu0
  %v1588 = vpop.trf.xlu0
  %v1589 = vpop.trf.xlu0
  %v1590 = vpop.trf.xlu0
  %v1591 = vpop.trf.xlu0
  %v1592 = vpop.trf.xlu0
  %v1593 = vpop.trf.xlu0
  %v1594 = vpop.trf.xlu0
  %v1595 = vpop.trf.xlu0
  %v1596 = vpop.trf.xlu0
  %v1597 = vpop.trf.xlu0
  %v1598 = vpop.trf.xlu0
  %1599 = vxpose.xlu0.b32.start [1/16] %v1564, 128
  %1600 = vxpose.xlu0.b32.cont [2/16] 0.0, 128
  %1601 = vxpose.xlu0.b32.cont [3/16] 0.0, 128
  %1602 = vxpose.xlu0.b32.cont [4/16] 0.0, 128
  %1603 = vxpose.xlu0.b32.cont [5/16] 0.0, 128
  %1604 = vxpose.xlu0.b32.cont [6/16] 0.0, 128
  %1605 = vxpose.xlu0.b32.cont [7/16] 0.0, 128
  %1606 = vxpose.xlu0.b32.cont [8/16] 0.0, 128
  %1607 = vxpose.xlu0.b32.cont [9/16] 0.0, 128
  %1608 = vxpose.xlu0.b32.cont [10/16] 0.0, 128
  %1609 = vxpose.xlu0.b32.cont [11/16] 0.0, 128
  %1610 = vxpose.xlu0.b32.cont [12/16] 0.0, 128
  %1611 = vxpose.xlu0.b32.cont [13/16] 0.0, 128
  %1612 = vxpose.xlu0.b32.cont [14/16] 0.0, 128
  %1613 = vxpose.xlu0.b32.cont [15/16] 0.0, 128
  %1614 = vxpose.xlu0.b32.end [16/16] 0.0, 128
  %v1615 = vpop.trf.xlu0
  %v1616 = vpop.trf.xlu0
  %v1617 = vpop.trf.xlu0
  %v1618 = vpop.trf.xlu0
  %v1619 = vpop.trf.xlu0
  %v1620 = vpop.trf.xlu0
  %v1621 = vpop.trf.xlu0
  %v1622 = vpop.trf.xlu0
  %v1623 = vpop.trf.xlu0
  %v1624 = vpop.trf.xlu0
  %v1625 = vpop.trf.xlu0
  %v1626 = vpop.trf.xlu0
  %v1627 = vpop.trf.xlu0
  %v1628 = vpop.trf.xlu0
  %v1629 = vpop.trf.xlu0
  %v1630 = vpop.trf.xlu0
  %1631 = vxpose.xlu0.b32.start [1/16] %v1565, 128
  %1632 = vxpose.xlu0.b32.cont [2/16] 0.0, 128
  %1633 = vxpose.xlu0.b32.cont [3/16] 0.0, 128
  %1634 = vxpose.xlu0.b32.cont [4/16] 0.0, 128
  %1635 = vxpose.xlu0.b32.cont [5/16] 0.0, 128
  %1636 = vxpose.xlu0.b32.cont [6/16] 0.0, 128
  %1637 = vxpose.xlu0.b32.cont [7/16] 0.0, 128
  %1638 = vxpose.xlu0.b32.cont [8/16] 0.0, 128
  %1639 = vxpose.xlu0.b32.cont [9/16] 0.0, 128
  %1640 = vxpose.xlu0.b32.cont [10/16] 0.0, 128
  %1641 = vxpose.xlu0.b32.cont [11/16] 0.0, 128
  %1642 = vxpose.xlu0.b32.cont [12/16] 0.0, 128
  %1643 = vxpose.xlu0.b32.cont [13/16] 0.0, 128
  %1644 = vxpose.xlu0.b32.cont [14/16] 0.0, 128
  %1645 = vxpose.xlu0.b32.cont [15/16] 0.0, 128
  %1646 = vxpose.xlu0.b32.end [16/16] 0.0, 128
  %v1647 = vpop.trf.xlu0
  %v1648 = vpop.trf.xlu0
  %v1649 = vpop.trf.xlu0
  %v1650 = vpop.trf.xlu0
  %v1651 = vpop.trf.xlu0
  %v1652 = vpop.trf.xlu0
  %v1653 = vpop.trf.xlu0
  %v1654 = vpop.trf.xlu0
  %v1655 = vpop.trf.xlu0
  %v1656 = vpop.trf.xlu0
  %v1657 = vpop.trf.xlu0
  %v1658 = vpop.trf.xlu0
  %v1659 = vpop.trf.xlu0
  %v1660 = vpop.trf.xlu0
  %v1661 = vpop.trf.xlu0
  %v1662 = vpop.trf.xlu0
  %1663 = vxpose.xlu0.b32.start [1/16] %v1566, 128
  %1664 = vxpose.xlu0.b32.cont [2/16] 0.0, 128
  %1665 = vxpose.xlu0.b32.cont [3/16] 0.0, 128
  %1666 = vxpose.xlu0.b32.cont [4/16] 0.0, 128
  %1667 = vxpose.xlu0.b32.cont [5/16] 0.0, 128
  %1668 = vxpose.xlu0.b32.cont [6/16] 0.0, 128
  %1669 = vxpose.xlu0.b32.cont [7/16] 0.0, 128
  %1670 = vxpose.xlu0.b32.cont [8/16] 0.0, 128
  %1671 = vxpose.xlu0.b32.cont [9/16] 0.0, 128
  %1672 = vxpose.xlu0.b32.cont [10/16] 0.0, 128
  %1673 = vxpose.xlu0.b32.cont [11/16] 0.0, 128
  %1674 = vxpose.xlu0.b32.cont [12/16] 0.0, 128
  %1675 = vxpose.xlu0.b32.cont [13/16] 0.0, 128
  %1676 = vxpose.xlu0.b32.cont [14/16] 0.0, 128
  %1677 = vxpose.xlu0.b32.cont [15/16] 0.0, 128
  %1678 = vxpose.xlu0.b32.end [16/16] 0.0, 128
  %v1679 = vpop.trf.xlu0
  %v1680 = vpop.trf.xlu0
  %v1681 = vpop.trf.xlu0
  %v1682 = vpop.trf.xlu0
  %v1683 = vpop.trf.xlu0
  %v1684 = vpop.trf.xlu0
  %v1685 = vpop.trf.xlu0
  %v1686 = vpop.trf.xlu0
  %v1687 = vpop.trf.xlu0
  %v1688 = vpop.trf.xlu0
  %v1689 = vpop.trf.xlu0
  %v1690 = vpop.trf.xlu0
  %v1691 = vpop.trf.xlu0
  %v1692 = vpop.trf.xlu0
  %v1693 = vpop.trf.xlu0
  %v1694 = vpop.trf.xlu0
  %vm1695 = vcmask 64512
  %1696 = vst.msk [vmem:[%s9] sm:$0xff] %vm1695, %v1583
  %1697 = vst.msk [vmem:[%s9 + $0x8] sm:$0xff] %vm1695, %v1584
  %1698 = vst.msk [vmem:[%s9 + $0x10] sm:$0xff] %vm1695, %v1585
  %1699 = vst.msk [vmem:[%s9 + $0x18] sm:$0xff] %vm1695, %v1586
  %1700 = vst.msk [vmem:[%s9 + $0x20] sm:$0xff] %vm1695, %v1587
  %1701 = vst.msk [vmem:[%s9 + $0x28] sm:$0xff] %vm1695, %v1588
  %1702 = vst.msk [vmem:[%s9 + $0x30] sm:$0xff] %vm1695, %v1589
  %1703 = vst.msk [vmem:[%s9 + $0x38] sm:$0xff] %vm1695, %v1590
  %1704 = vst.msk [vmem:[%s9 + $0x40] sm:$0xff] %vm1695, %v1591
  %1705 = vst.msk [vmem:[%s9 + $0x48] sm:$0xff] %vm1695, %v1592
  %1706 = vst.msk [vmem:[%s9 + $0x50] sm:$0xff] %vm1695, %v1593
  %1707 = vst.msk [vmem:[%s9 + $0x58] sm:$0xff] %vm1695, %v1594
  %1708 = vst.msk [vmem:[%s9 + $0x60] sm:$0xff] %vm1695, %v1595
  %1709 = vst.msk [vmem:[%s9 + $0x68] sm:$0xff] %vm1695, %v1596
  %1710 = vst.msk [vmem:[%s9 + $0x70] sm:$0xff] %vm1695, %v1597
  %1711 = vst.msk [vmem:[%s9 + $0x78] sm:$0xff] %vm1695, %v1598
  %1712 = vst.msk [vmem:[%s9 + $0x80] sm:$0xff] %vm1695, %v1615
  %1713 = vst.msk [vmem:[%s9 + $0x88] sm:$0xff] %vm1695, %v1616
  %1714 = vst.msk [vmem:[%s9 + $0x90] sm:$0xff] %vm1695, %v1617
  %1715 = vst.msk [vmem:[%s9 + $0x98] sm:$0xff] %vm1695, %v1618
  %1716 = vst.msk [vmem:[%s9 + $0xa0] sm:$0xff] %vm1695, %v1619
  %1717 = vst.msk [vmem:[%s9 + $0xa8] sm:$0xff] %vm1695, %v1620
  %1718 = vst.msk [vmem:[%s9 + $0xb0] sm:$0xff] %vm1695, %v1621
  %1719 = vst.msk [vmem:[%s9 + $0xb8] sm:$0xff] %vm1695, %v1622
  %1720 = vst.msk [vmem:[%s9 + $0xc0] sm:$0xff] %vm1695, %v1623
  %1721 = vst.msk [vmem:[%s9 + $0xc8] sm:$0xff] %vm1695, %v1624
  %1722 = vst.msk [vmem:[%s9 + $0xd0] sm:$0xff] %vm1695, %v1625
  %1723 = vst.msk [vmem:[%s9 + $0xd8] sm:$0xff] %vm1695, %v1626
  %1724 = vst.msk [vmem:[%s9 + $0xe0] sm:$0xff] %vm1695, %v1627
  %1725 = vst.msk [vmem:[%s9 + $0xe8] sm:$0xff] %vm1695, %v1628
  %1726 = vst.msk [vmem:[%s9 + $0xf0] sm:$0xff] %vm1695, %v1629
  %1727 = vst.msk [vmem:[%s9 + $0xf8] sm:$0xff] %vm1695, %v1630
  %1728 = vst.msk [vmem:[%s9 + $0x100] sm:$0xff] %vm1695, %v1647
  %1729 = vst.msk [vmem:[%s9 + $0x108] sm:$0xff] %vm1695, %v1648
  %1730 = vst.msk [vmem:[%s9 + $0x110] sm:$0xff] %vm1695, %v1649
  %1731 = vst.msk [vmem:[%s9 + $0x118] sm:$0xff] %vm1695, %v1650
  %1732 = vst.msk [vmem:[%s9 + $0x120] sm:$0xff] %vm1695, %v1651
  %1733 = vst.msk [vmem:[%s9 + $0x128] sm:$0xff] %vm1695, %v1652
  %1734 = vst.msk [vmem:[%s9 + $0x130] sm:$0xff] %vm1695, %v1653
  %1735 = vst.msk [vmem:[%s9 + $0x138] sm:$0xff] %vm1695, %v1654
  %1736 = vst.msk [vmem:[%s9 + $0x140] sm:$0xff] %vm1695, %v1655
  %1737 = vst.msk [vmem:[%s9 + $0x148] sm:$0xff] %vm1695, %v1656
  %1738 = vst.msk [vmem:[%s9 + $0x150] sm:$0xff] %vm1695, %v1657
  %1739 = vst.msk [vmem:[%s9 + $0x158] sm:$0xff] %vm1695, %v1658
  %1740 = vst.msk [vmem:[%s9 + $0x160] sm:$0xff] %vm1695, %v1659
  %1741 = vst.msk [vmem:[%s9 + $0x168] sm:$0xff] %vm1695, %v1660
  %1742 = vst.msk [vmem:[%s9 + $0x170] sm:$0xff] %vm1695, %v1661
  %1743 = vst.msk [vmem:[%s9 + $0x178] sm:$0xff] %vm1695, %v1662
  %1744 = vst.msk [vmem:[%s9 + $0x180] sm:$0xff] %vm1695, %v1679
  %1745 = vst.msk [vmem:[%s9 + $0x188] sm:$0xff] %vm1695, %v1680
  %1746 = vst.msk [vmem:[%s9 + $0x190] sm:$0xff] %vm1695, %v1681
  %1747 = vst.msk [vmem:[%s9 + $0x198] sm:$0xff] %vm1695, %v1682
  %1748 = vst.msk [vmem:[%s9 + $0x1a0] sm:$0xff] %vm1695, %v1683
  %1749 = vst.msk [vmem:[%s9 + $0x1a8] sm:$0xff] %vm1695, %v1684
  %1750 = vst.msk [vmem:[%s9 + $0x1b0] sm:$0xff] %vm1695, %v1685
  %1751 = vst.msk [vmem:[%s9 + $0x1b8] sm:$0xff] %vm1695, %v1686
  %1752 = vst.msk [vmem:[%s9 + $0x1c0] sm:$0xff] %vm1695, %v1687
  %1753 = vst.msk [vmem:[%s9 + $0x1c8] sm:$0xff] %vm1695, %v1688
  %1754 = vst.msk [vmem:[%s9 + $0x1d0] sm:$0xff] %vm1695, %v1689
  %1755 = vst.msk [vmem:[%s9 + $0x1d8] sm:$0xff] %vm1695, %v1690
  %1756 = vst.msk [vmem:[%s9 + $0x1e0] sm:$0xff] %vm1695, %v1691
  %1757 = vst.msk [vmem:[%s9 + $0x1e8] sm:$0xff] %vm1695, %v1692
  %1758 = vst.msk [vmem:[%s9 + $0x1f0] sm:$0xff] %vm1695, %v1693
  %1759 = vst.msk [vmem:[%s9 + $0x1f8] sm:$0xff] %vm1695, %v1694
  // Predicated region
  $region38: #{tpu_custom_call.1} parent=0 // pred_check
    _
  $region39: #{tpu_custom_call.1} parent=0 // pred_check_branch
    %1761 = sbr.rel (0) target = $region41
  $region40: #{tpu_custom_call.1} parent=0 // pred_region
    _
  $region41: #{tpu_custom_call.1} parent=0 // pred_fallthru
    _
  // Predicated region
  $region42: #{tpu_custom_call.1} parent=0 // pred_check
    _
  $region43: #{tpu_custom_call.1} parent=0 // pred_check_branch
    %1763 = sbr.rel (0) target = $region45
  $region44: #{tpu_custom_call.1} parent=0 // pred_region
    _
  $region45: #{tpu_custom_call.1} parent=0 // pred_fallthru
    _

</llo_original>
